<compile_context>
chip_gen: v5e
topology: v5e:2x2
jax: 0.10.0
libtpu: 0.0.40
codegen_flags: <defaults>
</compile_context>

<pallas_src>
import math

import jax
import jax.numpy as jnp
from jax import lax
from jax.experimental import pallas as pl
from jax.experimental.pallas import tpu as pltpu

# ---- small config consistent with the MossModel forward ----
VOCAB = 64
HIDDEN = 32
NUM_HEADS = 4
HEAD_DIM = HIDDEN // NUM_HEADS
INTERMEDIATE = 64
NUM_LAYERS = 2
RMS_EPS = 1e-5
BATCH = 2
SEQ = 8

_VMEM = pl.BlockSpec(memory_space=pltpu.MemorySpace.VMEM)


def _rms(x, w):
    # RMSNormalize: x * rsqrt(mean(x^2, -1) + eps) * weight  (all float32)
    var = jnp.mean(x * x, axis=-1, keepdims=True)
    return x * lax.rsqrt(var + RMS_EPS) * w


def moss_forward_kernel(ids_ref, mask_ref, cos_ref, sin_ref, embed_ref,
                        ln1_ref, wqkvs_ref, wo_ref, ln2_ref, wgu_ref, wd_ref,
                        normw_ref, out_ref):
    """Entire MossModel forward (eval, start_pos=0): embed -> L blocks -> norm."""
    B, N, H = BATCH, SEQ, HIDDEN
    R = B * N
    nh, d, I = NUM_HEADS, HEAD_DIM, INTERMEDIATE
    scale = 1.0 / math.sqrt(d)

    # ---- embedding lookup fused in-kernel as an exact one-hot matmul (MXU) ----
    vocab_iota = lax.broadcasted_iota(jnp.int32, (R, VOCAB), 1)
    onehot = (ids_ref[...] == vocab_iota).astype(jnp.float32)               # (R, V)
    h = jnp.dot(onehot, embed_ref[...],
                preferred_element_type=jnp.float32)                         # (R, H)

    # ---- attention bias (causal triu(-inf) + key padding), hoisted once ----
    row = lax.broadcasted_iota(jnp.int32, (N, N), 0)
    col = lax.broadcasted_iota(jnp.int32, (N, N), 1)
    causal = jnp.where(col > row, -jnp.inf, 0.0).astype(jnp.float32)        # (N, N)
    # NOTE: matches torch exactly (adds finfo.min; an all-zero mask row would
    # NaN in torch as well -- not reachable with the default all-ones mask).
    key_pad = (1.0 - mask_ref[...]) * jnp.finfo(jnp.float32).min            # (B, N)
    bias = causal[None, :, :] + key_pad[:, None, :]                         # (B, N, N)
    # Replicate along the head axis (head-major, batch within head block);
    # leading-dim concatenation is cheap (no lane/sublane movement).
    bias_s = jnp.concatenate([bias] * nh, axis=0)                           # (nh*B,N,N)

    cos2 = cos_ref[...]        # (R, 2H) interleaved cos for the [Q | K] block
    sin2 = sin_ref[...]        # (R, 2H) signed sin [-s, +s, ...] for [Q | K]

    # ---- statically unrolled layer loop; h stays a value (vreg-resident) ----
    for l in range(NUM_LAYERS):
        # input_layernorm + fused [Q | K | swap(Q) | swap(K) | V]: one matmul.
        hn = _rms(h, ln1_ref[l])
        qkvs = jnp.dot(hn, wqkvs_ref[l],
                       preferred_element_type=jnp.float32)                  # (R, 5H)

        # RotaryPositionEmbedding on interleaved (even, odd) pairs for Q and K
        # together (single 64-lane FMA pair); the pair swap is pre-baked into
        # the projection weight columns -> pure VPU here.
        qk_rot = qkvs[:, 0:2 * H] * cos2 + qkvs[:, 2 * H:4 * H] * sin2      # (R, 2H)
        v = qkvs[:, 4 * H:5 * H]                                            # (R, H)

        # Stack heads into the leading batch axis (head-major) so the whole
        # attention is ONE batched score->softmax->PV chain of batch nh*B.
        q_s = jnp.concatenate(
            [qk_rot[:, hh * d:(hh + 1) * d].reshape(B, N, d) for hh in range(nh)],
            axis=0)                                                          # (nh*B,N,d)
        k_s = jnp.concatenate(
            [qk_rot[:, H + hh * d:H + (hh + 1) * d].reshape(B, N, d)
             for hh in range(nh)], axis=0)                                   # (nh*B,N,d)
        v_s = jnp.concatenate(
            [v[:, hh * d:(hh + 1) * d].reshape(B, N, d) for hh in range(nh)],
            axis=0)                                                          # (nh*B,N,d)

        s = jnp.einsum("bqd,bkd->bqk", q_s, k_s,
                       preferred_element_type=jnp.float32) * scale + bias_s
        s = s - jnp.max(s, axis=-1, keepdims=True)
        p = jnp.exp(s)
        p = p * pl.reciprocal(jnp.sum(p, axis=-1, keepdims=True), approx=True)
        o_s = jnp.einsum("bqk,bkd->bqd", p, v_s,
                         preferred_element_type=jnp.float32)                 # (nh*B,N,d)

        # o_proj residual: per-head slices of wo (4 tiny MXU matmuls, MXU has
        # slack) -- no attention-output VMEM slab, no masked partial stores.
        wo_l = wo_ref[l]                                                     # (H, H)
        for hh in range(nh):
            h = h + jnp.dot(o_s[hh * B:(hh + 1) * B].reshape(R, d),
                            wo_l[hh * d:(hh + 1) * d, :],
                            preferred_element_type=jnp.float32)

        # post_attention_layernorm + fused gate/up (lane-dense 128) + SwiGLU.
        hn2 = _rms(h, ln2_ref[l])
        gu = jnp.dot(hn2, wgu_ref[l], preferred_element_type=jnp.float32)    # (R, 2I)
        g, u = gu[:, :I], gu[:, I:]
        h = h + jnp.dot(jax.nn.silu(g) * u, wd_ref[l],
                        preferred_element_type=jnp.float32)

    # final RMSNorm; single contiguous (R, H) store, no in-kernel reshape.
    out_ref[...] = _rms(h, normw_ref[...])


# ------------------------- host-side helpers (plain JAX) -------------------------

def rope_pair_tables(seq_len, head_dim):
    """Interleaved cos / signed-sin tables, (N, d) each, start_pos = 0."""
    inv_freq = 1.0 / (10000.0 ** (
        jnp.arange(0, head_dim, 2)[: head_dim // 2].astype(jnp.float32) / head_dim))
    freqs = jnp.outer(jnp.arange(seq_len, dtype=jnp.float32), inv_freq)      # (N, d/2)
    cos_pair = jnp.repeat(jnp.cos(freqs), 2, axis=-1)                        # [c0,c0,...]
    sin_pair = jnp.stack([-jnp.sin(freqs), jnp.sin(freqs)],
                         axis=-1).reshape(seq_len, head_dim)                 # [-s0,s0,...]
    return cos_pair, sin_pair


def init_params(key):
    keys = jax.random.split(key, 1 + NUM_LAYERS)
    embed = jax.random.normal(keys[0], (VOCAB, HIDDEN), jnp.float32) * 0.02
    layers = []
    for i in range(NUM_LAYERS):
        ks = jax.random.split(keys[1 + i], 7)
        layers.append(dict(
            ln1=jnp.ones((HIDDEN,), jnp.float32),
            wq=jax.random.normal(ks[0], (HIDDEN, HIDDEN), jnp.float32) * 0.02,
            wk=jax.random.normal(ks[1], (HIDDEN, HIDDEN), jnp.float32) * 0.02,
            wv=jax.random.normal(ks[2], (HIDDEN, HIDDEN), jnp.float32) * 0.02,
            wo=jax.random.normal(ks[3], (HIDDEN, HIDDEN), jnp.float32) * 0.02,
            ln2=jnp.ones((HIDDEN,), jnp.float32),
            wg=jax.random.normal(ks[4], (HIDDEN, INTERMEDIATE), jnp.float32) * 0.02,
            wu=jax.random.normal(ks[5], (HIDDEN, INTERMEDIATE), jnp.float32) * 0.02,
            wd=jax.random.normal(ks[6], (INTERMEDIATE, HIDDEN), jnp.float32) * 0.02,
        ))
    final_norm_w = jnp.ones((HIDDEN,), jnp.float32)
    return embed, layers, final_norm_w


def pack_params(layers):
    """Stack per-layer weights as (L, ...); fuse QKV (+ RoPE pair-swapped Q/K
    columns, ordered [Q | K | Qsw | Ksw | V]) into one (H, 5H) weight and
    gate/up into one (H, 2I) weight."""
    swap = jnp.arange(HIDDEN) ^ 1          # RoPE pair partner of each output column
    ln1 = jnp.stack([l["ln1"].reshape(1, HIDDEN) for l in layers])           # (L,1,H)
    ln2 = jnp.stack([l["ln2"].reshape(1, HIDDEN) for l in layers])           # (L,1,H)
    wqkvs = jnp.stack([jnp.concatenate(
        [l["wq"], l["wk"], l["wq"][:, swap], l["wk"][:, swap], l["wv"]], axis=1)
        for l in layers])                                                    # (L,H,5H)
    wo = jnp.stack([l["wo"] for l in layers])                                # (L,H,H)
    wgu = jnp.stack([jnp.concatenate([l["wg"], l["wu"]], axis=1)
                     for l in layers])                                       # (L,H,2I)
    wd = jnp.stack([l["wd"] for l in layers])                                # (L,I,H)
    return ln1, wqkvs, wo, ln2, wgu, wd


@jax.jit
def moss_model_forward(input_ids, attention_mask, embed, layers, final_norm_w):
    """jit'ed end-to-end forward: packing + tables + one pallas_call."""
    B, N = input_ids.shape
    ids = input_ids.reshape(B * N, 1).astype(jnp.int32)
    cos_pair, sin_pair = rope_pair_tables(N, HEAD_DIM)
    cos2 = jnp.tile(cos_pair, (B, 2 * NUM_HEADS))             # (B*N, 2H) for [Q|K]
    sin2 = jnp.tile(sin_pair, (B, 2 * NUM_HEADS))             # (B*N, 2H)
    ln1, wqkvs, wo, ln2, wgu, wd = pack_params(layers)
    normw = final_norm_w.reshape(1, HIDDEN)

    args = (ids, attention_mask.astype(jnp.float32), cos2, sin2, embed,
            ln1, wqkvs, wo, ln2, wgu, wd, normw)
    out_flat = pl.pallas_call(
        moss_forward_kernel,
        out_shape=jax.ShapeDtypeStruct((B * N, HIDDEN), jnp.float32),
        in_specs=[_VMEM] * len(args),
        out_specs=_VMEM,
    )(*args)
    return out_flat.reshape(B, N, HIDDEN)


def moss_forward_reference(input_ids, attention_mask, embed, layers, final_norm_w):
    """Pure-JAX reference mirroring MossModel.forward (eval, start_pos=0)."""
    B, N = input_ids.shape
    nh, d = NUM_HEADS, HEAD_DIM
    cos_pair, sin_pair = rope_pair_tables(N, d)

    def rms(x, w):
        var = jnp.mean(x * x, axis=-1, keepdims=True)
        return x * lax.rsqrt(var + RMS_EPS) * w

    def swap_pairs(x):
        x2 = x.reshape(*x.shape[:-1], d // 2, 2)
        return x2[..., ::-1].reshape(*x.shape)

    h = embed[input_ids]                                                     # (B,N,H)
    causal = jnp.where(jnp.arange(N)[None, :] > jnp.arange(N)[:, None],
                       -jnp.inf, 0.0).astype(jnp.float32)
    key_pad = (1.0 - attention_mask) * jnp.finfo(jnp.float32).min
    bias = causal[None, None] + key_pad[:, None, None, :]                    # (B,1,N,N)
    cosb = cos_pair[None, :, None, :]
    sinb = sin_pair[None, :, None, :]

    for p in layers:
        hn = rms(h, p["ln1"])
        q = (hn @ p["wq"]).reshape(B, N, nh, d)
        k = (hn @ p["wk"]).reshape(B, N, nh, d)
        v = (hn @ p["wv"]).reshape(B, N, nh, d)
        q = q * cosb + swap_pairs(q) * sinb
        k = k * cosb + swap_pairs(k) * sinb
        q, k, v = (x.transpose(0, 2, 1, 3) for x in (q, k, v))               # (B,nh,N,d)
        s = jnp.einsum("bhqd,bhkd->bhqk", q, k) / math.sqrt(d) + bias
        a = jax.nn.softmax(s, axis=-1)
        o = jnp.einsum("bhqk,bhkd->bhqd", a, v).transpose(0, 2, 1, 3)
        h = h + o.reshape(B, N, HIDDEN) @ p["wo"]
        hn2 = rms(h, p["ln2"])
        h = h + (jax.nn.silu(hn2 @ p["wg"]) * (hn2 @ p["wu"])) @ p["wd"]
    return rms(h, final_norm_w)


if __name__ == "__main__":
    key = jax.random.PRNGKey(0)
    k_params, k_ids = jax.random.split(key)
    embed, layers, final_norm_w = init_params(k_params)

    input_ids = jax.random.randint(k_ids, (BATCH, SEQ), 0, VOCAB)
    attention_mask = jnp.ones((BATCH, SEQ), jnp.float32)   # default mask in the module

    out = moss_model_forward(input_ids, attention_mask, embed, layers, final_norm_w)
    out = jax.block_until_ready(out)

    assert out.shape == (BATCH, SEQ, HIDDEN)
    assert bool(jnp.all(jnp.isfinite(out)))

    ref = moss_forward_reference(input_ids, attention_mask, embed, layers, final_norm_w)
    max_err = float(jnp.max(jnp.abs(out - ref)))
    assert max_err < 2e-2, f"kernel/reference mismatch: max abs err {max_err}"

    print("KERNEL_OK")
</pallas_src>

<mosaic_0001>
module attributes {stable_mosaic.version = 11 : i64} {
  func.func @moss_forward_kernel(%arg0: memref<16x1xi32, #tpu.memory_space<vmem>>, %arg1: memref<2x8xf32, #tpu.memory_space<vmem>>, %arg2: memref<16x64xf32, #tpu.memory_space<vmem>>, %arg3: memref<16x64xf32, #tpu.memory_space<vmem>>, %arg4: memref<64x32xf32, #tpu.memory_space<vmem>>, %arg5: memref<2x1x32xf32, #tpu.memory_space<vmem>>, %arg6: memref<2x32x160xf32, #tpu.memory_space<vmem>>, %arg7: memref<2x32x32xf32, #tpu.memory_space<vmem>>, %arg8: memref<2x1x32xf32, #tpu.memory_space<vmem>>, %arg9: memref<2x32x128xf32, #tpu.memory_space<vmem>>, %arg10: memref<2x64x32xf32, #tpu.memory_space<vmem>>, %arg11: memref<1x32xf32, #tpu.memory_space<vmem>>, %arg12: memref<16x32xf32, #tpu.memory_space<vmem>>) attributes {dimension_semantics = [], scalar_prefetch = 0 : i64, scratch_operands = 0 : i64, tpu.core_type = #tpu.core_type<tc>} {
    %0 = tpu.iota {dimensions = array<i32: 1>} : vector<16x64xi32>
    %c0 = arith.constant 0 : index
    %c0_0 = arith.constant 0 : index
    %1 = vector.load %arg0[%c0, %c0_0] : memref<16x1xi32, #tpu.memory_space<vmem>>, vector<16x1xi32>
    %2 = vector.broadcast %1 : vector<16x1xi32> to vector<16x64xi32>
    %3 = arith.cmpi eq, %2, %0 : vector<16x64xi32>
    %4 = arith.extui %3 : vector<16x64xi1> to vector<16x64xi32>
    %5 = arith.sitofp %4 : vector<16x64xi32> to vector<16x64xf32>
    %c0_1 = arith.constant 0 : index
    %c0_2 = arith.constant 0 : index
    %6 = vector.load %arg4[%c0_1, %c0_2] : memref<64x32xf32, #tpu.memory_space<vmem>>, vector<64x32xf32>
    %cst = arith.constant dense<0.000000e+00> : vector<16x32xf32>
    %7 = tpu.matmul %5, %6, %cst {dimension_numbers = #tpu.dot_dimension_numbers<[1], [0], [0], [1], [0, 0, 1, 1], [], []>} : vector<16x64xf32>, vector<64x32xf32>, vector<16x32xf32> -> vector<16x32xf32>
    %8 = tpu.iota {dimensions = array<i32: 0>} : vector<8x8xi32>
    %9 = tpu.iota {dimensions = array<i32: 1>} : vector<8x8xi32>
    %10 = arith.cmpi sgt, %9, %8 : vector<8x8xi32>
    %cst_3 = arith.constant 0xFF800000 : f32
    %cst_4 = arith.constant 0.000000e+00 : f32
    %11 = vector.broadcast %cst_3 : f32 to vector<8x8xf32>
    %12 = vector.broadcast %cst_4 : f32 to vector<8x8xf32>
    %13 = arith.select %10, %11, %12 : vector<8x8xi1>, vector<8x8xf32>
    %c0_5 = arith.constant 0 : index
    %c0_6 = arith.constant 0 : index
    %14 = vector.load %arg1[%c0_5, %c0_6] : memref<2x8xf32, #tpu.memory_space<vmem>>, vector<2x8xf32>
    %cst_7 = arith.constant 1.000000e+00 : f32
    %15 = vector.broadcast %cst_7 : f32 to vector<2x8xf32>
    %16 = arith.subf %15, %14 : vector<2x8xf32>
    %cst_8 = arith.constant -3.40282347E+38 : f32
    %17 = vector.broadcast %cst_8 : f32 to vector<2x8xf32>
    %18 = arith.mulf %16, %17 : vector<2x8xf32>
    %19 = vector.shape_cast %13 : vector<8x8xf32> to vector<1x8x8xf32>
    %20 = vector.shape_cast %18 : vector<2x8xf32> to vector<2x1x8xf32>
    %21 = vector.broadcast %19 : vector<1x8x8xf32> to vector<2x8x8xf32>
    %22 = vector.broadcast %20 : vector<2x1x8xf32> to vector<2x8x8xf32>
    %23 = arith.addf %21, %22 : vector<2x8x8xf32>
    %24 = tpu.concatenate %23, %23, %23, %23 in 0 : vector<2x8x8xf32>, vector<2x8x8xf32>, vector<2x8x8xf32>, vector<2x8x8xf32> -> vector<8x8x8xf32>
    %c0_9 = arith.constant 0 : index
    %c0_10 = arith.constant 0 : index
    %25 = vector.load %arg2[%c0_9, %c0_10] : memref<16x64xf32, #tpu.memory_space<vmem>>, vector<16x64xf32>
    %c0_11 = arith.constant 0 : index
    %c0_12 = arith.constant 0 : index
    %26 = vector.load %arg3[%c0_11, %c0_12] : memref<16x64xf32, #tpu.memory_space<vmem>>, vector<16x64xf32>
    %c0_13 = arith.constant 0 : index
    %c0_14 = arith.constant 0 : index
    %c0_15 = arith.constant 0 : index
    %27 = vector.load %arg5[%c0_13, %c0_14, %c0_15] : memref<2x1x32xf32, #tpu.memory_space<vmem>>, vector<1x1x32xf32>
    %28 = vector.shape_cast %27 : vector<1x1x32xf32> to vector<1x32xf32>
    %29 = arith.mulf %7, %7 : vector<16x32xf32>
    %cst_16 = arith.constant dense<0.000000e+00> : vector<16xf32>
    %30 = vector.multi_reduction <add>, %29, %cst_16 [1] : vector<16x32xf32> to vector<16xf32>
    %31 = vector.shape_cast %30 : vector<16xf32> to vector<16x1xf32>
    %cst_17 = arith.constant 3.200000e+01 : f32
    %32 = vector.broadcast %cst_17 : f32 to vector<16x1xf32>
    %33 = arith.divf %31, %32 : vector<16x1xf32>
    %cst_18 = arith.constant 9.99999974E-6 : f32
    %34 = vector.broadcast %cst_18 : f32 to vector<16x1xf32>
    %35 = arith.addf %33, %34 : vector<16x1xf32>
    %36 = math.rsqrt %35 : vector<16x1xf32>
    %37 = vector.broadcast %36 : vector<16x1xf32> to vector<16x32xf32>
    %38 = arith.mulf %7, %37 : vector<16x32xf32>
    %39 = vector.broadcast %28 : vector<1x32xf32> to vector<16x32xf32>
    %40 = arith.mulf %38, %39 : vector<16x32xf32>
    %c0_19 = arith.constant 0 : index
    %c0_20 = arith.constant 0 : index
    %c0_21 = arith.constant 0 : index
    %41 = vector.load %arg6[%c0_19, %c0_20, %c0_21] : memref<2x32x160xf32, #tpu.memory_space<vmem>>, vector<1x32x160xf32>
    %42 = vector.shape_cast %41 : vector<1x32x160xf32> to vector<32x160xf32>
    %cst_22 = arith.constant dense<0.000000e+00> : vector<16x160xf32>
    %43 = tpu.matmul %40, %42, %cst_22 {dimension_numbers = #tpu.dot_dimension_numbers<[1], [0], [0], [1], [0, 0, 1, 1], [], []>} : vector<16x32xf32>, vector<32x160xf32>, vector<16x160xf32> -> vector<16x160xf32>
    %44 = vector.extract_strided_slice %43 {offsets = [0, 0], sizes = [16, 64], strides = [1, 1]} : vector<16x160xf32> to vector<16x64xf32>
    %45 = arith.mulf %44, %25 : vector<16x64xf32>
    %46 = vector.extract_strided_slice %43 {offsets = [0, 64], sizes = [16, 64], strides = [1, 1]} : vector<16x160xf32> to vector<16x64xf32>
    %47 = arith.mulf %46, %26 : vector<16x64xf32>
    %48 = arith.addf %45, %47 : vector<16x64xf32>
    %49 = vector.extract_strided_slice %43 {offsets = [0, 128], sizes = [16, 32], strides = [1, 1]} : vector<16x160xf32> to vector<16x32xf32>
    %50 = vector.extract_strided_slice %48 {offsets = [0, 0], sizes = [16, 8], strides = [1, 1]} : vector<16x64xf32> to vector<16x8xf32>
    %51 = vector.shape_cast %50 : vector<16x8xf32> to vector<2x8x8xf32>
    %52 = vector.extract_strided_slice %48 {offsets = [0, 8], sizes = [16, 8], strides = [1, 1]} : vector<16x64xf32> to vector<16x8xf32>
    %53 = vector.shape_cast %52 : vector<16x8xf32> to vector<2x8x8xf32>
    %54 = vector.extract_strided_slice %48 {offsets = [0, 16], sizes = [16, 8], strides = [1, 1]} : vector<16x64xf32> to vector<16x8xf32>
    %55 = vector.shape_cast %54 : vector<16x8xf32> to vector<2x8x8xf32>
    %56 = vector.extract_strided_slice %48 {offsets = [0, 24], sizes = [16, 8], strides = [1, 1]} : vector<16x64xf32> to vector<16x8xf32>
    %57 = vector.shape_cast %56 : vector<16x8xf32> to vector<2x8x8xf32>
    %58 = tpu.concatenate %51, %53, %55, %57 in 0 : vector<2x8x8xf32>, vector<2x8x8xf32>, vector<2x8x8xf32>, vector<2x8x8xf32> -> vector<8x8x8xf32>
    %59 = vector.extract_strided_slice %48 {offsets = [0, 32], sizes = [16, 8], strides = [1, 1]} : vector<16x64xf32> to vector<16x8xf32>
    %60 = vector.shape_cast %59 : vector<16x8xf32> to vector<2x8x8xf32>
    %61 = vector.extract_strided_slice %48 {offsets = [0, 40], sizes = [16, 8], strides = [1, 1]} : vector<16x64xf32> to vector<16x8xf32>
    %62 = vector.shape_cast %61 : vector<16x8xf32> to vector<2x8x8xf32>
    %63 = vector.extract_strided_slice %48 {offsets = [0, 48], sizes = [16, 8], strides = [1, 1]} : vector<16x64xf32> to vector<16x8xf32>
    %64 = vector.shape_cast %63 : vector<16x8xf32> to vector<2x8x8xf32>
    %65 = vector.extract_strided_slice %48 {offsets = [0, 56], sizes = [16, 8], strides = [1, 1]} : vector<16x64xf32> to vector<16x8xf32>
    %66 = vector.shape_cast %65 : vector<16x8xf32> to vector<2x8x8xf32>
    %67 = tpu.concatenate %60, %62, %64, %66 in 0 : vector<2x8x8xf32>, vector<2x8x8xf32>, vector<2x8x8xf32>, vector<2x8x8xf32> -> vector<8x8x8xf32>
    %68 = vector.extract_strided_slice %49 {offsets = [0, 0], sizes = [16, 8], strides = [1, 1]} : vector<16x32xf32> to vector<16x8xf32>
    %69 = vector.shape_cast %68 : vector<16x8xf32> to vector<2x8x8xf32>
    %70 = vector.extract_strided_slice %49 {offsets = [0, 8], sizes = [16, 8], strides = [1, 1]} : vector<16x32xf32> to vector<16x8xf32>
    %71 = vector.shape_cast %70 : vector<16x8xf32> to vector<2x8x8xf32>
    %72 = vector.extract_strided_slice %49 {offsets = [0, 16], sizes = [16, 8], strides = [1, 1]} : vector<16x32xf32> to vector<16x8xf32>
    %73 = vector.shape_cast %72 : vector<16x8xf32> to vector<2x8x8xf32>
    %74 = vector.extract_strided_slice %49 {offsets = [0, 24], sizes = [16, 8], strides = [1, 1]} : vector<16x32xf32> to vector<16x8xf32>
    %75 = vector.shape_cast %74 : vector<16x8xf32> to vector<2x8x8xf32>
    %76 = tpu.concatenate %69, %71, %73, %75 in 0 : vector<2x8x8xf32>, vector<2x8x8xf32>, vector<2x8x8xf32>, vector<2x8x8xf32> -> vector<8x8x8xf32>
    "tpu.trace_start"() <{level = 10 : i32, message = "bqd,bkd->bqk"}> : () -> ()
    %cst_23 = arith.constant dense<0.000000e+00> : vector<8x8x8xf32>
    %77 = tpu.matmul %58, %67, %cst_23 {dimension_numbers = #tpu.dot_dimension_numbers<[2], [2], [1], [1], [0, 0, 0, 1, 1, 1], [0], [0]>} : vector<8x8x8xf32>, vector<8x8x8xf32>, vector<8x8x8xf32> -> vector<8x8x8xf32>
    "tpu.trace_stop"() : () -> ()
    %cst_24 = arith.constant 0.353553385 : f32
    %78 = vector.broadcast %cst_24 : f32 to vector<8x8x8xf32>
    %79 = arith.mulf %77, %78 : vector<8x8x8xf32>
    %80 = arith.addf %79, %24 : vector<8x8x8xf32>
    %cst_25 = arith.constant dense<0xFF800000> : vector<8x8xf32>
    %81 = vector.multi_reduction <maximumf>, %80, %cst_25 [2] : vector<8x8x8xf32> to vector<8x8xf32>
    %82 = vector.shape_cast %81 : vector<8x8xf32> to vector<8x8x1xf32>
    %83 = vector.broadcast %82 : vector<8x8x1xf32> to vector<8x8x8xf32>
    %84 = arith.subf %80, %83 : vector<8x8x8xf32>
    %85 = math.exp %84 : vector<8x8x8xf32>
    %cst_26 = arith.constant dense<0.000000e+00> : vector<8x8xf32>
    %86 = vector.multi_reduction <add>, %85, %cst_26 [2] : vector<8x8x8xf32> to vector<8x8xf32>
    %87 = vector.shape_cast %86 : vector<8x8xf32> to vector<8x8x1xf32>
    %88 = tpu.reciprocal %87 {approx = true} : vector<8x8x1xf32> -> vector<8x8x1xf32>
    %89 = vector.broadcast %88 : vector<8x8x1xf32> to vector<8x8x8xf32>
    %90 = arith.mulf %85, %89 : vector<8x8x8xf32>
    "tpu.trace_start"() <{level = 10 : i32, message = "bqk,bkd->bqd"}> : () -> ()
    %cst_27 = arith.constant dense<0.000000e+00> : vector<8x8x8xf32>
    %91 = tpu.matmul %90, %76, %cst_27 {dimension_numbers = #tpu.dot_dimension_numbers<[2], [1], [1], [2], [0, 0, 0, 1, 1, 2], [0], [0]>} : vector<8x8x8xf32>, vector<8x8x8xf32>, vector<8x8x8xf32> -> vector<8x8x8xf32>
    "tpu.trace_stop"() : () -> ()
    %c0_28 = arith.constant 0 : index
    %c0_29 = arith.constant 0 : index
    %c0_30 = arith.constant 0 : index
    %92 = vector.load %arg7[%c0_28, %c0_29, %c0_30] : memref<2x32x32xf32, #tpu.memory_space<vmem>>, vector<1x32x32xf32>
    %93 = vector.shape_cast %92 : vector<1x32x32xf32> to vector<32x32xf32>
    %94 = vector.extract_strided_slice %91 {offsets = [0, 0, 0], sizes = [2, 8, 8], strides = [1, 1, 1]} : vector<8x8x8xf32> to vector<2x8x8xf32>
    %95 = vector.shape_cast %94 : vector<2x8x8xf32> to vector<16x8xf32>
    %96 = vector.extract_strided_slice %93 {offsets = [0, 0], sizes = [8, 32], strides = [1, 1]} : vector<32x32xf32> to vector<8x32xf32>
    %cst_31 = arith.constant dense<0.000000e+00> : vector<16x32xf32>
    %97 = tpu.matmul %95, %96, %cst_31 {dimension_numbers = #tpu.dot_dimension_numbers<[1], [0], [0], [1], [0, 0, 1, 1], [], []>} : vector<16x8xf32>, vector<8x32xf32>, vector<16x32xf32> -> vector<16x32xf32>
    %98 = arith.addf %7, %97 : vector<16x32xf32>
    %99 = vector.extract_strided_slice %91 {offsets = [2, 0, 0], sizes = [2, 8, 8], strides = [1, 1, 1]} : vector<8x8x8xf32> to vector<2x8x8xf32>
    %100 = vector.shape_cast %99 : vector<2x8x8xf32> to vector<16x8xf32>
    %101 = vector.extract_strided_slice %93 {offsets = [8, 0], sizes = [8, 32], strides = [1, 1]} : vector<32x32xf32> to vector<8x32xf32>
    %cst_32 = arith.constant dense<0.000000e+00> : vector<16x32xf32>
    %102 = tpu.matmul %100, %101, %cst_32 {dimension_numbers = #tpu.dot_dimension_numbers<[1], [0], [0], [1], [0, 0, 1, 1], [], []>} : vector<16x8xf32>, vector<8x32xf32>, vector<16x32xf32> -> vector<16x32xf32>
    %103 = arith.addf %98, %102 : vector<16x32xf32>
    %104 = vector.extract_strided_slice %91 {offsets = [4, 0, 0], sizes = [2, 8, 8], strides = [1, 1, 1]} : vector<8x8x8xf32> to vector<2x8x8xf32>
    %105 = vector.shape_cast %104 : vector<2x8x8xf32> to vector<16x8xf32>
    %106 = vector.extract_strided_slice %93 {offsets = [16, 0], sizes = [8, 32], strides = [1, 1]} : vector<32x32xf32> to vector<8x32xf32>
    %cst_33 = arith.constant dense<0.000000e+00> : vector<16x32xf32>
    %107 = tpu.matmul %105, %106, %cst_33 {dimension_numbers = #tpu.dot_dimension_numbers<[1], [0], [0], [1], [0, 0, 1, 1], [], []>} : vector<16x8xf32>, vector<8x32xf32>, vector<16x32xf32> -> vector<16x32xf32>
    %108 = arith.addf %103, %107 : vector<16x32xf32>
    %109 = vector.extract_strided_slice %91 {offsets = [6, 0, 0], sizes = [2, 8, 8], strides = [1, 1, 1]} : vector<8x8x8xf32> to vector<2x8x8xf32>
    %110 = vector.shape_cast %109 : vector<2x8x8xf32> to vector<16x8xf32>
    %111 = vector.extract_strided_slice %93 {offsets = [24, 0], sizes = [8, 32], strides = [1, 1]} : vector<32x32xf32> to vector<8x32xf32>
    %cst_34 = arith.constant dense<0.000000e+00> : vector<16x32xf32>
    %112 = tpu.matmul %110, %111, %cst_34 {dimension_numbers = #tpu.dot_dimension_numbers<[1], [0], [0], [1], [0, 0, 1, 1], [], []>} : vector<16x8xf32>, vector<8x32xf32>, vector<16x32xf32> -> vector<16x32xf32>
    %113 = arith.addf %108, %112 : vector<16x32xf32>
    %c0_35 = arith.constant 0 : index
    %c0_36 = arith.constant 0 : index
    %c0_37 = arith.constant 0 : index
    %114 = vector.load %arg8[%c0_35, %c0_36, %c0_37] : memref<2x1x32xf32, #tpu.memory_space<vmem>>, vector<1x1x32xf32>
    %115 = vector.shape_cast %114 : vector<1x1x32xf32> to vector<1x32xf32>
    %116 = arith.mulf %113, %113 : vector<16x32xf32>
    %cst_38 = arith.constant dense<0.000000e+00> : vector<16xf32>
    %117 = vector.multi_reduction <add>, %116, %cst_38 [1] : vector<16x32xf32> to vector<16xf32>
    %118 = vector.shape_cast %117 : vector<16xf32> to vector<16x1xf32>
    %cst_39 = arith.constant 3.200000e+01 : f32
    %119 = vector.broadcast %cst_39 : f32 to vector<16x1xf32>
    %120 = arith.divf %118, %119 : vector<16x1xf32>
    %cst_40 = arith.constant 9.99999974E-6 : f32
    %121 = vector.broadcast %cst_40 : f32 to vector<16x1xf32>
    %122 = arith.addf %120, %121 : vector<16x1xf32>
    %123 = math.rsqrt %122 : vector<16x1xf32>
    %124 = vector.broadcast %123 : vector<16x1xf32> to vector<16x32xf32>
    %125 = arith.mulf %113, %124 : vector<16x32xf32>
    %126 = vector.broadcast %115 : vector<1x32xf32> to vector<16x32xf32>
    %127 = arith.mulf %125, %126 : vector<16x32xf32>
    %c0_41 = arith.constant 0 : index
    %c0_42 = arith.constant 0 : index
    %c0_43 = arith.constant 0 : index
    %128 = vector.load %arg9[%c0_41, %c0_42, %c0_43] : memref<2x32x128xf32, #tpu.memory_space<vmem>>, vector<1x32x128xf32>
    %129 = vector.shape_cast %128 : vector<1x32x128xf32> to vector<32x128xf32>
    %cst_44 = arith.constant dense<0.000000e+00> : vector<16x128xf32>
    %130 = tpu.matmul %127, %129, %cst_44 {dimension_numbers = #tpu.dot_dimension_numbers<[1], [0], [0], [1], [0, 0, 1, 1], [], []>} : vector<16x32xf32>, vector<32x128xf32>, vector<16x128xf32> -> vector<16x128xf32>
    %131 = vector.extract_strided_slice %130 {offsets = [0, 0], sizes = [16, 64], strides = [1, 1]} : vector<16x128xf32> to vector<16x64xf32>
    %132 = vector.extract_strided_slice %130 {offsets = [0, 64], sizes = [16, 64], strides = [1, 1]} : vector<16x128xf32> to vector<16x64xf32>
    %133 = arith.negf %131 : vector<16x64xf32>
    %134 = math.exp %133 : vector<16x64xf32>
    %cst_45 = arith.constant 1.000000e+00 : f32
    %135 = vector.broadcast %cst_45 : f32 to vector<16x64xf32>
    %136 = arith.addf %135, %134 : vector<16x64xf32>
    %137 = arith.divf %135, %136 : vector<16x64xf32>
    %138 = arith.mulf %131, %137 : vector<16x64xf32>
    %139 = arith.mulf %138, %132 : vector<16x64xf32>
    %c0_46 = arith.constant 0 : index
    %c0_47 = arith.constant 0 : index
    %c0_48 = arith.constant 0 : index
    %140 = vector.load %arg10[%c0_46, %c0_47, %c0_48] : memref<2x64x32xf32, #tpu.memory_space<vmem>>, vector<1x64x32xf32>
    %141 = vector.shape_cast %140 : vector<1x64x32xf32> to vector<64x32xf32>
    %cst_49 = arith.constant dense<0.000000e+00> : vector<16x32xf32>
    %142 = tpu.matmul %139, %141, %cst_49 {dimension_numbers = #tpu.dot_dimension_numbers<[1], [0], [0], [1], [0, 0, 1, 1], [], []>} : vector<16x64xf32>, vector<64x32xf32>, vector<16x32xf32> -> vector<16x32xf32>
    %143 = arith.addf %113, %142 : vector<16x32xf32>
    %c1 = arith.constant 1 : index
    %c0_50 = arith.constant 0 : index
    %c0_51 = arith.constant 0 : index
    %144 = vector.load %arg5[%c1, %c0_50, %c0_51] : memref<2x1x32xf32, #tpu.memory_space<vmem>>, vector<1x1x32xf32>
    %145 = vector.shape_cast %144 : vector<1x1x32xf32> to vector<1x32xf32>
    %146 = arith.mulf %143, %143 : vector<16x32xf32>
    %cst_52 = arith.constant dense<0.000000e+00> : vector<16xf32>
    %147 = vector.multi_reduction <add>, %146, %cst_52 [1] : vector<16x32xf32> to vector<16xf32>
    %148 = vector.shape_cast %147 : vector<16xf32> to vector<16x1xf32>
    %cst_53 = arith.constant 3.200000e+01 : f32
    %149 = vector.broadcast %cst_53 : f32 to vector<16x1xf32>
    %150 = arith.divf %148, %149 : vector<16x1xf32>
    %cst_54 = arith.constant 9.99999974E-6 : f32
    %151 = vector.broadcast %cst_54 : f32 to vector<16x1xf32>
    %152 = arith.addf %150, %151 : vector<16x1xf32>
    %153 = math.rsqrt %152 : vector<16x1xf32>
    %154 = vector.broadcast %153 : vector<16x1xf32> to vector<16x32xf32>
    %155 = arith.mulf %143, %154 : vector<16x32xf32>
    %156 = vector.broadcast %145 : vector<1x32xf32> to vector<16x32xf32>
    %157 = arith.mulf %155, %156 : vector<16x32xf32>
    %c1_55 = arith.constant 1 : index
    %c0_56 = arith.constant 0 : index
    %c0_57 = arith.constant 0 : index
    %158 = vector.load %arg6[%c1_55, %c0_56, %c0_57] : memref<2x32x160xf32, #tpu.memory_space<vmem>>, vector<1x32x160xf32>
    %159 = vector.shape_cast %158 : vector<1x32x160xf32> to vector<32x160xf32>
    %cst_58 = arith.constant dense<0.000000e+00> : vector<16x160xf32>
    %160 = tpu.matmul %157, %159, %cst_58 {dimension_numbers = #tpu.dot_dimension_numbers<[1], [0], [0], [1], [0, 0, 1, 1], [], []>} : vector<16x32xf32>, vector<32x160xf32>, vector<16x160xf32> -> vector<16x160xf32>
    %161 = vector.extract_strided_slice %160 {offsets = [0, 0], sizes = [16, 64], strides = [1, 1]} : vector<16x160xf32> to vector<16x64xf32>
    %162 = arith.mulf %161, %25 : vector<16x64xf32>
    %163 = vector.extract_strided_slice %160 {offsets = [0, 64], sizes = [16, 64], strides = [1, 1]} : vector<16x160xf32> to vector<16x64xf32>
    %164 = arith.mulf %163, %26 : vector<16x64xf32>
    %165 = arith.addf %162, %164 : vector<16x64xf32>
    %166 = vector.extract_strided_slice %160 {offsets = [0, 128], sizes = [16, 32], strides = [1, 1]} : vector<16x160xf32> to vector<16x32xf32>
    %167 = vector.extract_strided_slice %165 {offsets = [0, 0], sizes = [16, 8], strides = [1, 1]} : vector<16x64xf32> to vector<16x8xf32>
    %168 = vector.shape_cast %167 : vector<16x8xf32> to vector<2x8x8xf32>
    %169 = vector.extract_strided_slice %165 {offsets = [0, 8], sizes = [16, 8], strides = [1, 1]} : vector<16x64xf32> to vector<16x8xf32>
    %170 = vector.shape_cast %169 : vector<16x8xf32> to vector<2x8x8xf32>
    %171 = vector.extract_strided_slice %165 {offsets = [0, 16], sizes = [16, 8], strides = [1, 1]} : vector<16x64xf32> to vector<16x8xf32>
    %172 = vector.shape_cast %171 : vector<16x8xf32> to vector<2x8x8xf32>
    %173 = vector.extract_strided_slice %165 {offsets = [0, 24], sizes = [16, 8], strides = [1, 1]} : vector<16x64xf32> to vector<16x8xf32>
    %174 = vector.shape_cast %173 : vector<16x8xf32> to vector<2x8x8xf32>
    %175 = tpu.concatenate %168, %170, %172, %174 in 0 : vector<2x8x8xf32>, vector<2x8x8xf32>, vector<2x8x8xf32>, vector<2x8x8xf32> -> vector<8x8x8xf32>
    %176 = vector.extract_strided_slice %165 {offsets = [0, 32], sizes = [16, 8], strides = [1, 1]} : vector<16x64xf32> to vector<16x8xf32>
    %177 = vector.shape_cast %176 : vector<16x8xf32> to vector<2x8x8xf32>
    %178 = vector.extract_strided_slice %165 {offsets = [0, 40], sizes = [16, 8], strides = [1, 1]} : vector<16x64xf32> to vector<16x8xf32>
    %179 = vector.shape_cast %178 : vector<16x8xf32> to vector<2x8x8xf32>
    %180 = vector.extract_strided_slice %165 {offsets = [0, 48], sizes = [16, 8], strides = [1, 1]} : vector<16x64xf32> to vector<16x8xf32>
    %181 = vector.shape_cast %180 : vector<16x8xf32> to vector<2x8x8xf32>
    %182 = vector.extract_strided_slice %165 {offsets = [0, 56], sizes = [16, 8], strides = [1, 1]} : vector<16x64xf32> to vector<16x8xf32>
    %183 = vector.shape_cast %182 : vector<16x8xf32> to vector<2x8x8xf32>
    %184 = tpu.concatenate %177, %179, %181, %183 in 0 : vector<2x8x8xf32>, vector<2x8x8xf32>, vector<2x8x8xf32>, vector<2x8x8xf32> -> vector<8x8x8xf32>
    %185 = vector.extract_strided_slice %166 {offsets = [0, 0], sizes = [16, 8], strides = [1, 1]} : vector<16x32xf32> to vector<16x8xf32>
    %186 = vector.shape_cast %185 : vector<16x8xf32> to vector<2x8x8xf32>
    %187 = vector.extract_strided_slice %166 {offsets = [0, 8], sizes = [16, 8], strides = [1, 1]} : vector<16x32xf32> to vector<16x8xf32>
    %188 = vector.shape_cast %187 : vector<16x8xf32> to vector<2x8x8xf32>
    %189 = vector.extract_strided_slice %166 {offsets = [0, 16], sizes = [16, 8], strides = [1, 1]} : vector<16x32xf32> to vector<16x8xf32>
    %190 = vector.shape_cast %189 : vector<16x8xf32> to vector<2x8x8xf32>
    %191 = vector.extract_strided_slice %166 {offsets = [0, 24], sizes = [16, 8], strides = [1, 1]} : vector<16x32xf32> to vector<16x8xf32>
    %192 = vector.shape_cast %191 : vector<16x8xf32> to vector<2x8x8xf32>
    %193 = tpu.concatenate %186, %188, %190, %192 in 0 : vector<2x8x8xf32>, vector<2x8x8xf32>, vector<2x8x8xf32>, vector<2x8x8xf32> -> vector<8x8x8xf32>
    "tpu.trace_start"() <{level = 10 : i32, message = "bqd,bkd->bqk"}> : () -> ()
    %cst_59 = arith.constant dense<0.000000e+00> : vector<8x8x8xf32>
    %194 = tpu.matmul %175, %184, %cst_59 {dimension_numbers = #tpu.dot_dimension_numbers<[2], [2], [1], [1], [0, 0, 0, 1, 1, 1], [0], [0]>} : vector<8x8x8xf32>, vector<8x8x8xf32>, vector<8x8x8xf32> -> vector<8x8x8xf32>
    "tpu.trace_stop"() : () -> ()
    %cst_60 = arith.constant 0.353553385 : f32
    %195 = vector.broadcast %cst_60 : f32 to vector<8x8x8xf32>
    %196 = arith.mulf %194, %195 : vector<8x8x8xf32>
    %197 = arith.addf %196, %24 : vector<8x8x8xf32>
    %cst_61 = arith.constant dense<0xFF800000> : vector<8x8xf32>
    %198 = vector.multi_reduction <maximumf>, %197, %cst_61 [2] : vector<8x8x8xf32> to vector<8x8xf32>
    %199 = vector.shape_cast %198 : vector<8x8xf32> to vector<8x8x1xf32>
    %200 = vector.broadcast %199 : vector<8x8x1xf32> to vector<8x8x8xf32>
    %201 = arith.subf %197, %200 : vector<8x8x8xf32>
    %202 = math.exp %201 : vector<8x8x8xf32>
    %cst_62 = arith.constant dense<0.000000e+00> : vector<8x8xf32>
    %203 = vector.multi_reduction <add>, %202, %cst_62 [2] : vector<8x8x8xf32> to vector<8x8xf32>
    %204 = vector.shape_cast %203 : vector<8x8xf32> to vector<8x8x1xf32>
    %205 = tpu.reciprocal %204 {approx = true} : vector<8x8x1xf32> -> vector<8x8x1xf32>
    %206 = vector.broadcast %205 : vector<8x8x1xf32> to vector<8x8x8xf32>
    %207 = arith.mulf %202, %206 : vector<8x8x8xf32>
    "tpu.trace_start"() <{level = 10 : i32, message = "bqk,bkd->bqd"}> : () -> ()
    %cst_63 = arith.constant dense<0.000000e+00> : vector<8x8x8xf32>
    %208 = tpu.matmul %207, %193, %cst_63 {dimension_numbers = #tpu.dot_dimension_numbers<[2], [1], [1], [2], [0, 0, 0, 1, 1, 2], [0], [0]>} : vector<8x8x8xf32>, vector<8x8x8xf32>, vector<8x8x8xf32> -> vector<8x8x8xf32>
    "tpu.trace_stop"() : () -> ()
    %c1_64 = arith.constant 1 : index
    %c0_65 = arith.constant 0 : index
    %c0_66 = arith.constant 0 : index
    %209 = vector.load %arg7[%c1_64, %c0_65, %c0_66] : memref<2x32x32xf32, #tpu.memory_space<vmem>>, vector<1x32x32xf32>
    %210 = vector.shape_cast %209 : vector<1x32x32xf32> to vector<32x32xf32>
    %211 = vector.extract_strided_slice %208 {offsets = [0, 0, 0], sizes = [2, 8, 8], strides = [1, 1, 1]} : vector<8x8x8xf32> to vector<2x8x8xf32>
    %212 = vector.shape_cast %211 : vector<2x8x8xf32> to vector<16x8xf32>
    %213 = vector.extract_strided_slice %210 {offsets = [0, 0], sizes = [8, 32], strides = [1, 1]} : vector<32x32xf32> to vector<8x32xf32>
    %cst_67 = arith.constant dense<0.000000e+00> : vector<16x32xf32>
    %214 = tpu.matmul %212, %213, %cst_67 {dimension_numbers = #tpu.dot_dimension_numbers<[1], [0], [0], [1], [0, 0, 1, 1], [], []>} : vector<16x8xf32>, vector<8x32xf32>, vector<16x32xf32> -> vector<16x32xf32>
    %215 = arith.addf %143, %214 : vector<16x32xf32>
    %216 = vector.extract_strided_slice %208 {offsets = [2, 0, 0], sizes = [2, 8, 8], strides = [1, 1, 1]} : vector<8x8x8xf32> to vector<2x8x8xf32>
    %217 = vector.shape_cast %216 : vector<2x8x8xf32> to vector<16x8xf32>
    %218 = vector.extract_strided_slice %210 {offsets = [8, 0], sizes = [8, 32], strides = [1, 1]} : vector<32x32xf32> to vector<8x32xf32>
    %cst_68 = arith.constant dense<0.000000e+00> : vector<16x32xf32>
    %219 = tpu.matmul %217, %218, %cst_68 {dimension_numbers = #tpu.dot_dimension_numbers<[1], [0], [0], [1], [0, 0, 1, 1], [], []>} : vector<16x8xf32>, vector<8x32xf32>, vector<16x32xf32> -> vector<16x32xf32>
    %220 = arith.addf %215, %219 : vector<16x32xf32>
    %221 = vector.extract_strided_slice %208 {offsets = [4, 0, 0], sizes = [2, 8, 8], strides = [1, 1, 1]} : vector<8x8x8xf32> to vector<2x8x8xf32>
    %222 = vector.shape_cast %221 : vector<2x8x8xf32> to vector<16x8xf32>
    %223 = vector.extract_strided_slice %210 {offsets = [16, 0], sizes = [8, 32], strides = [1, 1]} : vector<32x32xf32> to vector<8x32xf32>
    %cst_69 = arith.constant dense<0.000000e+00> : vector<16x32xf32>
    %224 = tpu.matmul %222, %223, %cst_69 {dimension_numbers = #tpu.dot_dimension_numbers<[1], [0], [0], [1], [0, 0, 1, 1], [], []>} : vector<16x8xf32>, vector<8x32xf32>, vector<16x32xf32> -> vector<16x32xf32>
    %225 = arith.addf %220, %224 : vector<16x32xf32>
    %226 = vector.extract_strided_slice %208 {offsets = [6, 0, 0], sizes = [2, 8, 8], strides = [1, 1, 1]} : vector<8x8x8xf32> to vector<2x8x8xf32>
    %227 = vector.shape_cast %226 : vector<2x8x8xf32> to vector<16x8xf32>
    %228 = vector.extract_strided_slice %210 {offsets = [24, 0], sizes = [8, 32], strides = [1, 1]} : vector<32x32xf32> to vector<8x32xf32>
    %cst_70 = arith.constant dense<0.000000e+00> : vector<16x32xf32>
    %229 = tpu.matmul %227, %228, %cst_70 {dimension_numbers = #tpu.dot_dimension_numbers<[1], [0], [0], [1], [0, 0, 1, 1], [], []>} : vector<16x8xf32>, vector<8x32xf32>, vector<16x32xf32> -> vector<16x32xf32>
    %230 = arith.addf %225, %229 : vector<16x32xf32>
    %c1_71 = arith.constant 1 : index
    %c0_72 = arith.constant 0 : index
    %c0_73 = arith.constant 0 : index
    %231 = vector.load %arg8[%c1_71, %c0_72, %c0_73] : memref<2x1x32xf32, #tpu.memory_space<vmem>>, vector<1x1x32xf32>
    %232 = vector.shape_cast %231 : vector<1x1x32xf32> to vector<1x32xf32>
    %233 = arith.mulf %230, %230 : vector<16x32xf32>
    %cst_74 = arith.constant dense<0.000000e+00> : vector<16xf32>
    %234 = vector.multi_reduction <add>, %233, %cst_74 [1] : vector<16x32xf32> to vector<16xf32>
    %235 = vector.shape_cast %234 : vector<16xf32> to vector<16x1xf32>
    %cst_75 = arith.constant 3.200000e+01 : f32
    %236 = vector.broadcast %cst_75 : f32 to vector<16x1xf32>
    %237 = arith.divf %235, %236 : vector<16x1xf32>
    %cst_76 = arith.constant 9.99999974E-6 : f32
    %238 = vector.broadcast %cst_76 : f32 to vector<16x1xf32>
    %239 = arith.addf %237, %238 : vector<16x1xf32>
    %240 = math.rsqrt %239 : vector<16x1xf32>
    %241 = vector.broadcast %240 : vector<16x1xf32> to vector<16x32xf32>
    %242 = arith.mulf %230, %241 : vector<16x32xf32>
    %243 = vector.broadcast %232 : vector<1x32xf32> to vector<16x32xf32>
    %244 = arith.mulf %242, %243 : vector<16x32xf32>
    %c1_77 = arith.constant 1 : index
    %c0_78 = arith.constant 0 : index
    %c0_79 = arith.constant 0 : index
    %245 = vector.load %arg9[%c1_77, %c0_78, %c0_79] : memref<2x32x128xf32, #tpu.memory_space<vmem>>, vector<1x32x128xf32>
    %246 = vector.shape_cast %245 : vector<1x32x128xf32> to vector<32x128xf32>
    %cst_80 = arith.constant dense<0.000000e+00> : vector<16x128xf32>
    %247 = tpu.matmul %244, %246, %cst_80 {dimension_numbers = #tpu.dot_dimension_numbers<[1], [0], [0], [1], [0, 0, 1, 1], [], []>} : vector<16x32xf32>, vector<32x128xf32>, vector<16x128xf32> -> vector<16x128xf32>
    %248 = vector.extract_strided_slice %247 {offsets = [0, 0], sizes = [16, 64], strides = [1, 1]} : vector<16x128xf32> to vector<16x64xf32>
    %249 = vector.extract_strided_slice %247 {offsets = [0, 64], sizes = [16, 64], strides = [1, 1]} : vector<16x128xf32> to vector<16x64xf32>
    %250 = arith.negf %248 : vector<16x64xf32>
    %251 = math.exp %250 : vector<16x64xf32>
    %cst_81 = arith.constant 1.000000e+00 : f32
    %252 = vector.broadcast %cst_81 : f32 to vector<16x64xf32>
    %253 = arith.addf %252, %251 : vector<16x64xf32>
    %254 = arith.divf %252, %253 : vector<16x64xf32>
    %255 = arith.mulf %248, %254 : vector<16x64xf32>
    %256 = arith.mulf %255, %249 : vector<16x64xf32>
    %c1_82 = arith.constant 1 : index
    %c0_83 = arith.constant 0 : index
    %c0_84 = arith.constant 0 : index
    %257 = vector.load %arg10[%c1_82, %c0_83, %c0_84] : memref<2x64x32xf32, #tpu.memory_space<vmem>>, vector<1x64x32xf32>
    %258 = vector.shape_cast %257 : vector<1x64x32xf32> to vector<64x32xf32>
    %cst_85 = arith.constant dense<0.000000e+00> : vector<16x32xf32>
    %259 = tpu.matmul %256, %258, %cst_85 {dimension_numbers = #tpu.dot_dimension_numbers<[1], [0], [0], [1], [0, 0, 1, 1], [], []>} : vector<16x64xf32>, vector<64x32xf32>, vector<16x32xf32> -> vector<16x32xf32>
    %260 = arith.addf %230, %259 : vector<16x32xf32>
    %c0_86 = arith.constant 0 : index
    %c0_87 = arith.constant 0 : index
    %261 = vector.load %arg11[%c0_86, %c0_87] : memref<1x32xf32, #tpu.memory_space<vmem>>, vector<1x32xf32>
    %262 = arith.mulf %260, %260 : vector<16x32xf32>
    %cst_88 = arith.constant dense<0.000000e+00> : vector<16xf32>
    %263 = vector.multi_reduction <add>, %262, %cst_88 [1] : vector<16x32xf32> to vector<16xf32>
    %264 = vector.shape_cast %263 : vector<16xf32> to vector<16x1xf32>
    %cst_89 = arith.constant 3.200000e+01 : f32
    %265 = vector.broadcast %cst_89 : f32 to vector<16x1xf32>
    %266 = arith.divf %264, %265 : vector<16x1xf32>
    %cst_90 = arith.constant 9.99999974E-6 : f32
    %267 = vector.broadcast %cst_90 : f32 to vector<16x1xf32>
    %268 = arith.addf %266, %267 : vector<16x1xf32>
    %269 = math.rsqrt %268 : vector<16x1xf32>
    %270 = vector.broadcast %269 : vector<16x1xf32> to vector<16x32xf32>
    %271 = arith.mulf %260, %270 : vector<16x32xf32>
    %272 = vector.broadcast %261 : vector<1x32xf32> to vector<16x32xf32>
    %273 = arith.mulf %271, %272 : vector<16x32xf32>
    %c0_91 = arith.constant 0 : index
    %c0_92 = arith.constant 0 : index
    %274 = vector.load %arg12[%c0_91, %c0_92] : memref<16x32xf32, #tpu.memory_space<vmem>>, vector<16x32xf32>
    tpu.vector_store %arg12[%c0_91, %c0_92], %273 {strides = array<i32>} : memref<16x32xf32, #tpu.memory_space<vmem>>, vector<16x32xf32>,
    return
  }
}

</mosaic_0001>

<llo_original>
// kernel: tile.14
$region0: #{tile.14}
  #allocation0 [shape = 's32[1]{0}', space=sflag, size = 0x4, scoped, tag = 'scoped memory for tile.14']
  %s0 = inlined_call_operand.vmem [shape: f32[8,8], index: 0, kind: input, shape index: {}]
  %s1 = inlined_call_operand.vmem [shape: f32[2,8,8,8], index: 1, kind: output, shape index: {}]
  // Predicated region
  $region2: #{tile.14} parent=0 // pred_check
    _
  $region3: #{tile.14} parent=0 // pred_check_branch
    %3 = sbr.rel (0) target = $region5
  $region4: #{tile.14} parent=0 // pred_region
    _
  $region5: #{tile.14} parent=0 // pred_fallthru
    _
  %v4 = vld [vmem:[%s0] ss:$0 sm:$0xff]
  %5 = vst [vmem:[%s1] sm:$0xff] %v4
  %s6 = scalar_lea.vmem %s1, 64
  %7 = vst [vmem:[%s6] sm:$0xff] %v4
  %s8 = scalar_lea.vmem %s0, 1
  %v9 = vld [vmem:[%s8] ss:$0 sm:$0xff]
  %s10 = scalar_lea.vmem %s1, 8
  %11 = vst [vmem:[%s10] sm:$0xff] %v9
  %s12 = scalar_lea.vmem %s1, 72
  %13 = vst [vmem:[%s12] sm:$0xff] %v9
  %s14 = scalar_lea.vmem %s0, 2
  %v15 = vld [vmem:[%s14] ss:$0 sm:$0xff]
  %s16 = scalar_lea.vmem %s1, 16
  %17 = vst [vmem:[%s16] sm:$0xff] %v15
  %s18 = scalar_lea.vmem %s1, 80
  %19 = vst [vmem:[%s18] sm:$0xff] %v15
  %s20 = scalar_lea.vmem %s0, 3
  %v21 = vld [vmem:[%s20] ss:$0 sm:$0xff]
  %s22 = scalar_lea.vmem %s1, 24
  %23 = vst [vmem:[%s22] sm:$0xff] %v21
  %s24 = scalar_lea.vmem %s1, 88
  %25 = vst [vmem:[%s24] sm:$0xff] %v21
  %s26 = scalar_lea.vmem %s0, 4
  %v27 = vld [vmem:[%s26] ss:$0 sm:$0xff]
  %s28 = scalar_lea.vmem %s1, 32
  %29 = vst [vmem:[%s28] sm:$0xff] %v27
  %s30 = scalar_lea.vmem %s1, 96
  %31 = vst [vmem:[%s30] sm:$0xff] %v27
  %s32 = scalar_lea.vmem %s0, 5
  %v33 = vld [vmem:[%s32] ss:$0 sm:$0xff]
  %s34 = scalar_lea.vmem %s1, 40
  %35 = vst [vmem:[%s34] sm:$0xff] %v33
  %s36 = scalar_lea.vmem %s1, 104
  %37 = vst [vmem:[%s36] sm:$0xff] %v33
  %s38 = scalar_lea.vmem %s0, 6
  %v39 = vld [vmem:[%s38] ss:$0 sm:$0xff]
  %s40 = scalar_lea.vmem %s1, 48
  %41 = vst [vmem:[%s40] sm:$0xff] %v39
  %s42 = scalar_lea.vmem %s1, 112
  %43 = vst [vmem:[%s42] sm:$0xff] %v39
  %s44 = scalar_lea.vmem %s0, 7
  %v45 = vld [vmem:[%s44] ss:$0 sm:$0xff]
  %s46 = scalar_lea.vmem %s1, 56
  %47 = vst [vmem:[%s46] sm:$0xff] %v45
  %s48 = scalar_lea.vmem %s1, 120
  %49 = vst [vmem:[%s48] sm:$0xff] %v45

// kernel: tile.15
$region0: #{tile.15}
  %s0 = inlined_call_operand.vmem [shape: f32[2,8,8,8], index: 0, kind: input, shape index: {}]
  %s1 = inlined_call_operand.vmem [shape: f32[16,64], index: 1, kind: output, shape index: {}]
  %v2 = vld [vmem:[%s0] ss:$8 sm:$0xf]
  %v3 = vld [vmem:[%s0] ss:$8 sm:$0xf0]
  %vm4 = vcmask 1047556
  %v5 = vsel %vm4, %v3, %v2
  %vm6 = vcmask 64512
  %7 = vst.msk [vmem:[%s1] sm:$0xff] %vm6, %v5
  %s8 = scalar_lea.vmem %s0, 64
  %v9 = vld [vmem:[%s8] ss:$8 sm:$0xf]
  %s10 = scalar_lea.vmem %s0, 64
  %v11 = vld [vmem:[%s10] ss:$8 sm:$0xf0]
  %vm12 = vcmask 1047556
  %v13 = vsel %vm12, %v11, %v9
  %vm14 = vcmask 64512
  %s15 = scalar_lea.vmem %s1, 8
  %16 = vst.msk [vmem:[%s15] sm:$0xff] %vm14, %v13
  %s17 = scalar_lea.vmem %s0, 7
  %v18 = vld [vmem:[%s17] ss:$8 sm:$0xf]
  %s19 = scalar_lea.vmem %s0, 7
  %v20 = vld [vmem:[%s19] ss:$8 sm:$0xf0]
  %vm21 = vcmask 1047556
  %v22 = vsel %vm21, %v20, %v18
  %23 = vrot.lane.b32.xlu0 %v22, 56
  %v24 = vpop.permute.xlu0 %23
  %vm25 = vcmask 523712
  %26 = vst.msk [vmem:[%s1] sm:$0xff] %vm25, %v24
  %s27 = scalar_lea.vmem %s0, 71
  %v28 = vld [vmem:[%s27] ss:$8 sm:$0xf]
  %s29 = scalar_lea.vmem %s0, 71
  %v30 = vld [vmem:[%s29] ss:$8 sm:$0xf0]
  %vm31 = vcmask 1047556
  %v32 = vsel %vm31, %v30, %v28
  %33 = vrot.lane.b32.xlu0 %v32, 56
  %v34 = vpop.permute.xlu0 %33
  %vm35 = vcmask 523712
  %s36 = scalar_lea.vmem %s1, 8
  %37 = vst.msk [vmem:[%s36] sm:$0xff] %vm35, %v34
  %s38 = scalar_lea.vmem %s0, 6
  %v39 = vld [vmem:[%s38] ss:$8 sm:$0xf]
  %s40 = scalar_lea.vmem %s0, 6
  %v41 = vld [vmem:[%s40] ss:$8 sm:$0xf0]
  %vm42 = vcmask 1047556
  %v43 = vsel %vm42, %v41, %v39
  %44 = vrot.lane.b32.xlu0 %v43, 48
  %v45 = vpop.permute.xlu0 %44
  %vm46 = vcmask 458112
  %47 = vst.msk [vmem:[%s1] sm:$0xff] %vm46, %v45
  %s48 = scalar_lea.vmem %s0, 70
  %v49 = vld [vmem:[%s48] ss:$8 sm:$0xf]
  %s50 = scalar_lea.vmem %s0, 70
  %v51 = vld [vmem:[%s50] ss:$8 sm:$0xf0]
  %vm52 = vcmask 1047556
  %v53 = vsel %vm52, %v51, %v49
  %54 = vrot.lane.b32.xlu0 %v53, 48
  %v55 = vpop.permute.xlu0 %54
  %vm56 = vcmask 458112
  %s57 = scalar_lea.vmem %s1, 8
  %58 = vst.msk [vmem:[%s57] sm:$0xff] %vm56, %v55
  %s59 = scalar_lea.vmem %s0, 5
  %v60 = vld [vmem:[%s59] ss:$8 sm:$0xf]
  %s61 = scalar_lea.vmem %s0, 5
  %v62 = vld [vmem:[%s61] ss:$8 sm:$0xf0]
  %vm63 = vcmask 1047556
  %v64 = vsel %vm63, %v62, %v60
  %65 = vrot.lane.b32.xlu0 %v64, 40
  %v66 = vpop.permute.xlu0 %65
  %vm67 = vcmask 392512
  %68 = vst.msk [vmem:[%s1] sm:$0xff] %vm67, %v66
  %s69 = scalar_lea.vmem %s0, 69
  %v70 = vld [vmem:[%s69] ss:$8 sm:$0xf]
  %s71 = scalar_lea.vmem %s0, 69
  %v72 = vld [vmem:[%s71] ss:$8 sm:$0xf0]
  %vm73 = vcmask 1047556
  %v74 = vsel %vm73, %v72, %v70
  %75 = vrot.lane.b32.xlu0 %v74, 40
  %v76 = vpop.permute.xlu0 %75
  %vm77 = vcmask 392512
  %s78 = scalar_lea.vmem %s1, 8
  %79 = vst.msk [vmem:[%s78] sm:$0xff] %vm77, %v76
  %s80 = scalar_lea.vmem %s0, 4
  %v81 = vld [vmem:[%s80] ss:$8 sm:$0xf]
  %s82 = scalar_lea.vmem %s0, 4
  %v83 = vld [vmem:[%s82] ss:$8 sm:$0xf0]
  %vm84 = vcmask 1047556
  %v85 = vsel %vm84, %v83, %v81
  %86 = vrot.lane.b32.xlu0 %v85, 32
  %v87 = vpop.permute.xlu0 %86
  %vm88 = vcmask 326912
  %89 = vst.msk [vmem:[%s1] sm:$0xff] %vm88, %v87
  %s90 = scalar_lea.vmem %s0, 68
  %v91 = vld [vmem:[%s90] ss:$8 sm:$0xf]
  %s92 = scalar_lea.vmem %s0, 68
  %v93 = vld [vmem:[%s92] ss:$8 sm:$0xf0]
  %vm94 = vcmask 1047556
  %v95 = vsel %vm94, %v93, %v91
  %96 = vrot.lane.b32.xlu0 %v95, 32
  %v97 = vpop.permute.xlu0 %96
  %vm98 = vcmask 326912
  %s99 = scalar_lea.vmem %s1, 8
  %100 = vst.msk [vmem:[%s99] sm:$0xff] %vm98, %v97
  %s101 = scalar_lea.vmem %s0, 3
  %v102 = vld [vmem:[%s101] ss:$8 sm:$0xf]
  %s103 = scalar_lea.vmem %s0, 3
  %v104 = vld [vmem:[%s103] ss:$8 sm:$0xf0]
  %vm105 = vcmask 1047556
  %v106 = vsel %vm105, %v104, %v102
  %107 = vrot.lane.b32.xlu0 %v106, 24
  %v108 = vpop.permute.xlu0 %107
  %vm109 = vcmask 261312
  %110 = vst.msk [vmem:[%s1] sm:$0xff] %vm109, %v108
  %s111 = scalar_lea.vmem %s0, 67
  %v112 = vld [vmem:[%s111] ss:$8 sm:$0xf]
  %s113 = scalar_lea.vmem %s0, 67
  %v114 = vld [vmem:[%s113] ss:$8 sm:$0xf0]
  %vm115 = vcmask 1047556
  %v116 = vsel %vm115, %v114, %v112
  %117 = vrot.lane.b32.xlu0 %v116, 24
  %v118 = vpop.permute.xlu0 %117
  %vm119 = vcmask 261312
  %s120 = scalar_lea.vmem %s1, 8
  %121 = vst.msk [vmem:[%s120] sm:$0xff] %vm119, %v118
  %s122 = scalar_lea.vmem %s0, 2
  %v123 = vld [vmem:[%s122] ss:$8 sm:$0xf]
  %s124 = scalar_lea.vmem %s0, 2
  %v125 = vld [vmem:[%s124] ss:$8 sm:$0xf0]
  %vm126 = vcmask 1047556
  %v127 = vsel %vm126, %v125, %v123
  %128 = vrot.lane.b32.xlu0 %v127, 16
  %v129 = vpop.permute.xlu0 %128
  %vm130 = vcmask 195712
  %131 = vst.msk [vmem:[%s1] sm:$0xff] %vm130, %v129
  %s132 = scalar_lea.vmem %s0, 66
  %v133 = vld [vmem:[%s132] ss:$8 sm:$0xf]
  %s134 = scalar_lea.vmem %s0, 66
  %v135 = vld [vmem:[%s134] ss:$8 sm:$0xf0]
  %vm136 = vcmask 1047556
  %v137 = vsel %vm136, %v135, %v133
  %138 = vrot.lane.b32.xlu0 %v137, 16
  %v139 = vpop.permute.xlu0 %138
  %vm140 = vcmask 195712
  %s141 = scalar_lea.vmem %s1, 8
  %142 = vst.msk [vmem:[%s141] sm:$0xff] %vm140, %v139
  %s143 = scalar_lea.vmem %s0, 1
  %v144 = vld [vmem:[%s143] ss:$8 sm:$0xf]
  %s145 = scalar_lea.vmem %s0, 1
  %v146 = vld [vmem:[%s145] ss:$8 sm:$0xf0]
  %vm147 = vcmask 1047556
  %v148 = vsel %vm147, %v146, %v144
  %149 = vrot.lane.b32.xlu0 %v148, 8
  %v150 = vpop.permute.xlu0 %149
  %vm151 = vcmask 130112
  %152 = vst.msk [vmem:[%s1] sm:$0xff] %vm151, %v150
  %s153 = scalar_lea.vmem %s0, 65
  %v154 = vld [vmem:[%s153] ss:$8 sm:$0xf]
  %s155 = scalar_lea.vmem %s0, 65
  %v156 = vld [vmem:[%s155] ss:$8 sm:$0xf0]
  %vm157 = vcmask 1047556
  %v158 = vsel %vm157, %v156, %v154
  %159 = vrot.lane.b32.xlu0 %v158, 8
  %v160 = vpop.permute.xlu0 %159
  %vm161 = vcmask 130112
  %s162 = scalar_lea.vmem %s1, 8
  %163 = vst.msk [vmem:[%s162] sm:$0xff] %vm161, %v160

// kernel: moss_model_forward.1
$region0: #{moss_model_forward.1}
  #allocation0 [shape = 'u32[]', space=smem, size = 0x4, offset = 0x4, fixed_abs, tag = 'smem constant byte address 0x4 - core index']
  #allocation1 [shape = 'u32[72,128]{1,0:T(1,128)}', space=vmem, size = 0x9000, scoped, tag = 'internal scratch']
  %s0 = inlined_call_operand.vmem [shape: s32[16,1], index: 0, kind: input, shape index: {}]
  %s1 = inlined_call_operand.vmem [shape: f32[2,8], index: 1, kind: input, shape index: {}]
  %s2 = inlined_call_operand.vmem [shape: f32[16,64], index: 2, kind: input, shape index: {}]
  %s3 = inlined_call_operand.vmem [shape: f32[16,64], index: 3, kind: input, shape index: {}]
  %s4 = inlined_call_operand.vmem [shape: f32[64,32], index: 4, kind: input, shape index: {}]
  %s5 = inlined_call_operand.vmem [shape: f32[2,1,32], index: 5, kind: input, shape index: {}]
  %s6 = inlined_call_operand.vmem [shape: f32[2,32,160], index: 6, kind: input, shape index: {}]
  %s7 = inlined_call_operand.vmem [shape: f32[2,32,32], index: 7, kind: input, shape index: {}]
  %s8 = inlined_call_operand.vmem [shape: f32[2,1,32], index: 8, kind: input, shape index: {}]
  %s9 = inlined_call_operand.vmem [shape: f32[2,32,128], index: 9, kind: input, shape index: {}]
  %s10 = inlined_call_operand.vmem [shape: f32[2,64,32], index: 10, kind: input, shape index: {}]
  %s11 = inlined_call_operand.vmem [shape: f32[1,32], index: 11, kind: input, shape index: {}]
  %s12 = inlined_call_operand.hbm [shape: f32[16,32], index: 12, kind: output, shape index: {}]
  %s13 = sld [smem:[#allocation0]]
  $region58: #{moss_model_forward.1} parent=0
    _
  %s15 = ssub.s32 1, %s13
  %s16 = scalar_select 0, %s15, %s13
  $region1: #{moss_model_forward.1} parent=0
    #allocation2 [shape = 'u8[8192]{0}', space=vmem, size = 0x2000, scoped, tag = 'output window, operand 0, single buffered']
    #allocation3 [shape = 's32[1]{0}', space=sflag, size = 0x4, scoped, tag = 'scoped memory for moss_model_forward.1']
    %17 = vsyncpa [#allocation3], 0
    // Predicated region
    $region2: #{moss_model_forward.1} parent=1 // pred_check
      _
    $region3: #{moss_model_forward.1} parent=1 // pred_check_branch
      %19 = sbr.rel (0) target = $region5
    $region4: #{moss_model_forward.1} parent=1 // pred_region
      _
    $region5: #{moss_model_forward.1} parent=1 // pred_fallthru
      _
    // Predicated region
    $region6: #{moss_model_forward.1} parent=1 // pred_check
      _
    $region7: #{moss_model_forward.1} parent=1 // pred_check_branch
      %21 = sbr.rel (0) target = $region9
    $region8: #{moss_model_forward.1} parent=1 // pred_region
      _
    $region9: #{moss_model_forward.1} parent=1 // pred_fallthru
      _
    // Predicated region
    $region10: #{moss_model_forward.1} parent=1 // pred_check
      _
    $region11: #{moss_model_forward.1} parent=1 // pred_check_branch
      %23 = sbr.rel (0) target = $region13
    $region12: #{moss_model_forward.1} parent=1 // pred_region
      _
    $region13: #{moss_model_forward.1} parent=1 // pred_fallthru
      _
    // Predicated region
    $region14: #{moss_model_forward.1} parent=1 // pred_check
      _
    $region15: #{moss_model_forward.1} parent=1 // pred_check_branch
      %25 = sbr.rel (0) target = $region17
    $region16: #{moss_model_forward.1} parent=1 // pred_region
      _
    $region17: #{moss_model_forward.1} parent=1 // pred_fallthru
      _
    // Predicated region
    $region18: #{moss_model_forward.1} parent=1 // pred_check
      _
    $region19: #{moss_model_forward.1} parent=1 // pred_check_branch
      %27 = sbr.rel (0) target = $region21
    $region20: #{moss_model_forward.1} parent=1 // pred_region
      _
    $region21: #{moss_model_forward.1} parent=1 // pred_fallthru
      _
    // Predicated region
    $region22: #{moss_model_forward.1} parent=1 // pred_check
      _
    $region23: #{moss_model_forward.1} parent=1 // pred_check_branch
      %29 = sbr.rel (0) target = $region25
    $region24: #{moss_model_forward.1} parent=1 // pred_region
      _
    $region25: #{moss_model_forward.1} parent=1 // pred_fallthru
      _
    // Predicated region
    $region26: #{moss_model_forward.1} parent=1 // pred_check
      _
    $region27: #{moss_model_forward.1} parent=1 // pred_check_branch
      %31 = sbr.rel (0) target = $region29
    $region28: #{moss_model_forward.1} parent=1 // pred_region
      _
    $region29: #{moss_model_forward.1} parent=1 // pred_fallthru
      _
    // Predicated region
    $region30: #{moss_model_forward.1} parent=1 // pred_check
      _
    $region31: #{moss_model_forward.1} parent=1 // pred_check_branch
      %33 = sbr.rel (0) target = $region33
    $region32: #{moss_model_forward.1} parent=1 // pred_region
      _
    $region33: #{moss_model_forward.1} parent=1 // pred_fallthru
      _
    // Predicated region
    $region34: #{moss_model_forward.1} parent=1 // pred_check
      _
    $region35: #{moss_model_forward.1} parent=1 // pred_check_branch
      %35 = sbr.rel (0) target = $region37
    $region36: #{moss_model_forward.1} parent=1 // pred_region
      _
    $region37: #{moss_model_forward.1} parent=1 // pred_fallthru
      _
    // Predicated region
    $region38: #{moss_model_forward.1} parent=1 // pred_check
      _
    $region39: #{moss_model_forward.1} parent=1 // pred_check_branch
      %37 = sbr.rel (0) target = $region41
    $region40: #{moss_model_forward.1} parent=1 // pred_region
      _
    $region41: #{moss_model_forward.1} parent=1 // pred_fallthru
      _
    // Predicated region
    $region42: #{moss_model_forward.1} parent=1 // pred_check
      _
    $region43: #{moss_model_forward.1} parent=1 // pred_check_branch
      %39 = sbr.rel (0) target = $region45
    $region44: #{moss_model_forward.1} parent=1 // pred_region
      _
    $region45: #{moss_model_forward.1} parent=1 // pred_fallthru
      _
    // Predicated region
    $region46: #{moss_model_forward.1} parent=1 // pred_check
      _
    $region47: #{moss_model_forward.1} parent=1 // pred_check_branch
      %41 = sbr.rel (0) target = $region49
    $region48: #{moss_model_forward.1} parent=1 // pred_region
      _
    $region49: #{moss_model_forward.1} parent=1 // pred_fallthru
      _
    %v42 = vlaneseq
    %v43 = vand.u32 %v42, 127
    %v44 = vld [vmem:[%s0] sm:$0xff]
    %v45 = vld [vmem:[%s0 + $0x8] sm:$0xff]
    %46 = vset.pattern.permute.xlu0 0
    %47 = vperm.xlu0 %46, %v44
    %v48 = vpop.permute.xlu0 %47
    %49 = vset.pattern.permute.xlu0 0
    %50 = vperm.xlu0 %49, %v45
    %v51 = vpop.permute.xlu0 %50
    %vm52 = vcmp.eq.s32.totalorder %v48, %v43
    %vm53 = vcmp.eq.s32.totalorder %v51, %v43
    %v54 = vsel %vm52, 1, 0
    %v55 = vsel %vm53, 1, 0
    %v56 = vcvt.s32.f32 %v54
    %v57 = vcvt.s32.f32 %v55
    %v58 = vld [vmem:[%s4] sm:$0xff]
    %v59 = vld [vmem:[%s4 + $0x8] sm:$0xff]
    %v60 = vld [vmem:[%s4 + $0x10] sm:$0xff]
    %v61 = vld [vmem:[%s4 + $0x18] sm:$0xff]
    %v62 = vld [vmem:[%s4 + $0x20] sm:$0xff]
    %v63 = vld [vmem:[%s4 + $0x28] sm:$0xff]
    %v64 = vld [vmem:[%s4 + $0x30] sm:$0xff]
    %v65 = vld [vmem:[%s4 + $0x38] sm:$0xff]
    %vm66 = vcmask 523264
    %v68 = vsel %vm66, %v56, 0
    %v71 = vsel %vm66, %v57, 0
    %73 = vmatpush.msra.mxu0 0.0
    %74 = vmatpush.msra.mxu0 0.0
    %75 = vmatpush.msra.mxu0 0.0
    %76 = vmatpush.msra.mxu0 0.0
    %77 = vmatpush.msra.mxu0 0.0
    %78 = vmatpush.msra.mxu0 0.0
    %79 = vmatpush.msra.mxu0 0.0
    %80 = vmatpush.msra.mxu0 0.0
    %81 = vmatpush.msra.mxu0 %v65
    %82 = vmatpush.msra.mxu0 %v64
    %83 = vmatpush.msra.mxu0 %v63
    %84 = vmatpush.msra.mxu0 %v62
    %85 = vmatpush.msra.mxu0 %v61
    %86 = vmatpush.msra.mxu0 %v60
    %87 = vmatpush.msra.mxu0 %v59
    %88 = vmatpush.msra.mxu0 %v58
    %89 = vmatmul.f32.gmra.mxu0 %v68
    %v90 = vpop.f32.mrf.mxu0
    %v91 = vadd.f32 0.0, %v90
    %92 = vmatmul.f32.gmra.mxu0 %v71
    %v93 = vpop.f32.mrf.mxu0
    %v94 = vadd.f32 0.0, %v93
    %95 = vdwg.mxu0
    %v96 = vlaneseq
    %v97 = vshrl.u32 %v96, 7
    %vm98 = vcmp.gt.s32.totalorder %v43, %v97
    %v99 = vsel %vm98, -inf, 0.0
    %v100 = vld [vmem:[%s1] sm:$0x3]
    %v101 = vsub.f32 1.0, %v100
    %v102 = vmul.f32 %v101, -3.4028235e+38
    %v104 = vrot.slane %v102, 1
    %v105 = vperm.slane %v102, 0
    %v106 = vperm.slane %v104, 0
    %v109 = vadd.f32 %v99, %v105
    %v110 = vadd.f32 %v99, %v106
    %v111 = vld [vmem:[%s2] sm:$0xff]
    %v112 = vld [vmem:[%s2 + $0x8] sm:$0xff]
    %v113 = vld [vmem:[%s3] sm:$0xff]
    %v114 = vld [vmem:[%s3 + $0x8] sm:$0xff]
    %v115 = vld [vmem:[%s5] sm:$0x1]
    %v116 = vmul.f32 %v91, %v91
    %v117 = vmul.f32 %v94, %v94
    %vm118 = vcmask 261120
    %v119 = vsel %vm118, %v116, 0.0
    %120 = vadd.xlane.f32.xlu0 %v119
    %v121 = vpop.xlane.xlu0 %120
    %v122 = vsel %vm118, %v117, 0.0
    %123 = vadd.xlane.f32.xlu0 %v122
    %v124 = vpop.xlane.xlu0 %123
    %v125 = vrcp.pop 32.0
    %v126 = vmul.f32 32.0, %v125
    %v127 = vsub.f32 1.0, %v126
    %v128 = vmul.f32 %v125, %v127
    %v129 = vadd.f32 %v125, %v128
    %vm130 = vweird.f32 %v125
    %v131 = vsel %vm130, %v125, %v129
    %v132 = vmul.f32 %v121, %v131
    %v133 = vmul.f32 %v124, %v131
    %v134 = vadd.f32 %v132, 1e-05
    %v135 = vadd.f32 %v133, 1e-05
    %v136 = vrsqrt.pop %v134
    %v137 = vmul.f32 %v136, %v134
    %v138 = vmul.f32 %v137, %v136
    %v139 = vmul.f32 0.5, %v138
    %v140 = vsub.f32 1.5, %v139
    %v141 = vmul.f32 %v136, %v140
    %vm142 = vweird.f32 %v134
    %vm143 = vweird.f32 %v136
    %vm144 = vmor %vm142, %vm143
    %v145 = vsel %vm144, %v136, %v141
    %v146 = vrsqrt.pop %v135
    %v147 = vmul.f32 %v146, %v135
    %v148 = vmul.f32 %v147, %v146
    %v149 = vmul.f32 0.5, %v148
    %v150 = vsub.f32 1.5, %v149
    %v151 = vmul.f32 %v146, %v150
    %vm152 = vweird.f32 %v135
    %vm153 = vweird.f32 %v146
    %vm154 = vmor %vm152, %vm153
    %v155 = vsel %vm154, %v146, %v151
    %v156 = vmul.f32 %v91, %v145
    %v157 = vmul.f32 %v94, %v155
    %v159 = vperm.slane %v115, 0
    %v161 = vmul.f32 %v156, %v159
    %v162 = vmul.f32 %v157, %v159
    %v163 = vld [vmem:[%s6] sm:$0xff]
    %v164 = vld [vmem:[%s6 + $0x8] sm:$0xff]
    %v165 = vld [vmem:[%s6 + $0x10] sm:$0xff]
    %v166 = vld [vmem:[%s6 + $0x18] sm:$0xff]
    %v167 = vld [vmem:[%s6 + $0x20] sm:$0xff]
    %v168 = vld [vmem:[%s6 + $0x28] sm:$0xff]
    %v169 = vld [vmem:[%s6 + $0x30] sm:$0xff]
    %v170 = vld [vmem:[%s6 + $0x38] sm:$0xff]
    %v172 = vsel %vm118, %v161, 0
    %v175 = vsel %vm118, %v162, 0
    %177 = vmatpush.msra.mxu0 0.0
    %178 = vmatpush.msra.mxu0 0.0
    %179 = vmatpush.msra.mxu0 0.0
    %180 = vmatpush.msra.mxu0 0.0
    %181 = vmatpush.msra.mxu0 0.0
    %182 = vmatpush.msra.mxu0 0.0
    %183 = vmatpush.msra.mxu0 0.0
    %184 = vmatpush.msra.mxu0 0.0
    %185 = vmatpush.msra.mxu0 0.0
    %186 = vmatpush.msra.mxu0 0.0
    %187 = vmatpush.msra.mxu0 0.0
    %188 = vmatpush.msra.mxu0 0.0
    %189 = vmatpush.msra.mxu0 %v169
    %190 = vmatpush.msra.mxu0 %v167
    %191 = vmatpush.msra.mxu0 %v165
    %192 = vmatpush.msra.mxu0 %v163
    %193 = vmatmul.f32.gmra.mxu0 %v172
    %v194 = vpop.f32.mrf.mxu0
    %v195 = vadd.f32 0.0, %v194
    %196 = vmatmul.f32.gmra.mxu0 %v175
    %v197 = vpop.f32.mrf.mxu0
    %v198 = vadd.f32 0.0, %v197
    %199 = vdwg.mxu0
    %200 = vmatpush.msra.mxu0 0.0
    %201 = vmatpush.msra.mxu0 0.0
    %202 = vmatpush.msra.mxu0 0.0
    %203 = vmatpush.msra.mxu0 0.0
    %204 = vmatpush.msra.mxu0 0.0
    %205 = vmatpush.msra.mxu0 0.0
    %206 = vmatpush.msra.mxu0 0.0
    %207 = vmatpush.msra.mxu0 0.0
    %208 = vmatpush.msra.mxu0 0.0
    %209 = vmatpush.msra.mxu0 0.0
    %210 = vmatpush.msra.mxu0 0.0
    %211 = vmatpush.msra.mxu0 0.0
    %212 = vmatpush.msra.mxu0 %v170
    %213 = vmatpush.msra.mxu0 %v168
    %214 = vmatpush.msra.mxu0 %v166
    %215 = vmatpush.msra.mxu0 %v164
    %216 = vmatmul.f32.gmra.mxu0 %v172
    %v217 = vpop.f32.mrf.mxu0
    %v218 = vadd.f32 0.0, %v217
    %219 = vmatmul.f32.gmra.mxu0 %v175
    %v220 = vpop.f32.mrf.mxu0
    %v221 = vadd.f32 0.0, %v220
    %222 = vdwg.mxu0
    %v223 = vmul.f32 %v195, %v111
    %v224 = vmul.f32 %v198, %v112
    %227 = vrot.lane.b32.xlu0 %v113, 64
    %v228 = vpop.permute.xlu0 %227
    %229 = vrot.lane.b32.xlu0 %v114, 64
    %v230 = vpop.permute.xlu0 %229
    %v233 = vmul.f32 %v195, %v228
    %v234 = vmul.f32 %v198, %v230
    %237 = vrot.lane.b32.xlu0 %v233, 64
    %v238 = vpop.permute.xlu0 %237
    %239 = vrot.lane.b32.xlu0 %v234, 64
    %v240 = vpop.permute.xlu0 %239
    %v243 = vadd.f32 %v223, %v238
    %v244 = vadd.f32 %v224, %v240
    %247 = vrot.lane.b32.xlu0 %v243, 120
    %v248 = vpop.permute.xlu0 %247
    %249 = vrot.lane.b32.xlu0 %v244, 120
    %v250 = vpop.permute.xlu0 %249
    %251 = vrot.lane.b32.xlu0 %v243, 112
    %v252 = vpop.permute.xlu0 %251
    %253 = vrot.lane.b32.xlu0 %v244, 112
    %v254 = vpop.permute.xlu0 %253
    %255 = vrot.lane.b32.xlu0 %v243, 104
    %v256 = vpop.permute.xlu0 %255
    %257 = vrot.lane.b32.xlu0 %v244, 104
    %v258 = vpop.permute.xlu0 %257
    %261 = vrot.lane.b32.xlu0 %v218, 120
    %v262 = vpop.permute.xlu0 %261
    %263 = vrot.lane.b32.xlu0 %v221, 120
    %v264 = vpop.permute.xlu0 %263
    %267 = vrot.lane.b32.xlu0 %v218, 112
    %v268 = vpop.permute.xlu0 %267
    %269 = vrot.lane.b32.xlu0 %v221, 112
    %v270 = vpop.permute.xlu0 %269
    %273 = vrot.lane.b32.xlu0 %v218, 104
    %v274 = vpop.permute.xlu0 %273
    %275 = vrot.lane.b32.xlu0 %v221, 104
    %v276 = vpop.permute.xlu0 %275
    %279 = vrot.lane.b32.xlu0 %v243, 96
    %v280 = vpop.permute.xlu0 %279
    %vm281 = vcmask 64512
    %v282 = vsel %vm281, %v243, 0
    %v284 = vsel %vm281, %v280, 0
    %286 = vmatpush.xpose.msra.mxu0 0.0
    %287 = vmatpush.xpose.msra.mxu0 0.0
    %288 = vmatpush.xpose.msra.mxu0 0.0
    %289 = vmatpush.xpose.msra.mxu0 0.0
    %290 = vmatpush.xpose.msra.mxu0 0.0
    %291 = vmatpush.xpose.msra.mxu0 0.0
    %292 = vmatpush.xpose.msra.mxu0 0.0
    %293 = vmatpush.xpose.msra.mxu0 0.0
    %294 = vmatpush.xpose.msra.mxu0 0.0
    %295 = vmatpush.xpose.msra.mxu0 0.0
    %296 = vmatpush.xpose.msra.mxu0 0.0
    %297 = vmatpush.xpose.msra.mxu0 0.0
    %298 = vmatpush.xpose.msra.mxu0 0.0
    %299 = vmatpush.xpose.msra.mxu0 0.0
    %300 = vmatpush.xpose.msra.mxu0 0.0
    %301 = vmatpush.xpose.msra.mxu0 %v284
    %302 = vmatmul.f32.gmra.mxu0 %v282
    %v303 = vpop.f32.mrf.mxu0
    %v304 = vadd.f32 0.0, %v303
    %305 = vdwg.mxu0
    %306 = vrot.lane.b32.xlu0 %v244, 96
    %v307 = vpop.permute.xlu0 %306
    %v308 = vsel %vm281, %v244, 0
    %v310 = vsel %vm281, %v307, 0
    %312 = vmatpush.xpose.msra.mxu0 0.0
    %313 = vmatpush.xpose.msra.mxu0 0.0
    %314 = vmatpush.xpose.msra.mxu0 0.0
    %315 = vmatpush.xpose.msra.mxu0 0.0
    %316 = vmatpush.xpose.msra.mxu0 0.0
    %317 = vmatpush.xpose.msra.mxu0 0.0
    %318 = vmatpush.xpose.msra.mxu0 0.0
    %319 = vmatpush.xpose.msra.mxu0 0.0
    %320 = vmatpush.xpose.msra.mxu0 0.0
    %321 = vmatpush.xpose.msra.mxu0 0.0
    %322 = vmatpush.xpose.msra.mxu0 0.0
    %323 = vmatpush.xpose.msra.mxu0 0.0
    %324 = vmatpush.xpose.msra.mxu0 0.0
    %325 = vmatpush.xpose.msra.mxu0 0.0
    %326 = vmatpush.xpose.msra.mxu0 0.0
    %327 = vmatpush.xpose.msra.mxu0 %v310
    %328 = vmatmul.f32.gmra.mxu0 %v308
    %v329 = vpop.f32.mrf.mxu0
    %v330 = vadd.f32 0.0, %v329
    %331 = vdwg.mxu0
    %332 = vrot.lane.b32.xlu0 %v248, 96
    %v333 = vpop.permute.xlu0 %332
    %v334 = vsel %vm281, %v248, 0
    %v336 = vsel %vm281, %v333, 0
    %338 = vmatpush.xpose.msra.mxu0 0.0
    %339 = vmatpush.xpose.msra.mxu0 0.0
    %340 = vmatpush.xpose.msra.mxu0 0.0
    %341 = vmatpush.xpose.msra.mxu0 0.0
    %342 = vmatpush.xpose.msra.mxu0 0.0
    %343 = vmatpush.xpose.msra.mxu0 0.0
    %344 = vmatpush.xpose.msra.mxu0 0.0
    %345 = vmatpush.xpose.msra.mxu0 0.0
    %346 = vmatpush.xpose.msra.mxu0 0.0
    %347 = vmatpush.xpose.msra.mxu0 0.0
    %348 = vmatpush.xpose.msra.mxu0 0.0
    %349 = vmatpush.xpose.msra.mxu0 0.0
    %350 = vmatpush.xpose.msra.mxu0 0.0
    %351 = vmatpush.xpose.msra.mxu0 0.0
    %352 = vmatpush.xpose.msra.mxu0 0.0
    %353 = vmatpush.xpose.msra.mxu0 %v336
    %354 = vmatmul.f32.gmra.mxu0 %v334
    %v355 = vpop.f32.mrf.mxu0
    %v356 = vadd.f32 0.0, %v355
    %357 = vdwg.mxu0
    %358 = vrot.lane.b32.xlu0 %v250, 96
    %v359 = vpop.permute.xlu0 %358
    %v360 = vsel %vm281, %v250, 0
    %v362 = vsel %vm281, %v359, 0
    %364 = vmatpush.xpose.msra.mxu0 0.0
    %365 = vmatpush.xpose.msra.mxu0 0.0
    %366 = vmatpush.xpose.msra.mxu0 0.0
    %367 = vmatpush.xpose.msra.mxu0 0.0
    %368 = vmatpush.xpose.msra.mxu0 0.0
    %369 = vmatpush.xpose.msra.mxu0 0.0
    %370 = vmatpush.xpose.msra.mxu0 0.0
    %371 = vmatpush.xpose.msra.mxu0 0.0
    %372 = vmatpush.xpose.msra.mxu0 0.0
    %373 = vmatpush.xpose.msra.mxu0 0.0
    %374 = vmatpush.xpose.msra.mxu0 0.0
    %375 = vmatpush.xpose.msra.mxu0 0.0
    %376 = vmatpush.xpose.msra.mxu0 0.0
    %377 = vmatpush.xpose.msra.mxu0 0.0
    %378 = vmatpush.xpose.msra.mxu0 0.0
    %379 = vmatpush.xpose.msra.mxu0 %v362
    %380 = vmatmul.f32.gmra.mxu0 %v360
    %v381 = vpop.f32.mrf.mxu0
    %v382 = vadd.f32 0.0, %v381
    %383 = vdwg.mxu0
    %384 = vrot.lane.b32.xlu0 %v252, 96
    %v385 = vpop.permute.xlu0 %384
    %v386 = vsel %vm281, %v252, 0
    %v388 = vsel %vm281, %v385, 0
    %390 = vmatpush.xpose.msra.mxu0 0.0
    %391 = vmatpush.xpose.msra.mxu0 0.0
    %392 = vmatpush.xpose.msra.mxu0 0.0
    %393 = vmatpush.xpose.msra.mxu0 0.0
    %394 = vmatpush.xpose.msra.mxu0 0.0
    %395 = vmatpush.xpose.msra.mxu0 0.0
    %396 = vmatpush.xpose.msra.mxu0 0.0
    %397 = vmatpush.xpose.msra.mxu0 0.0
    %398 = vmatpush.xpose.msra.mxu0 0.0
    %399 = vmatpush.xpose.msra.mxu0 0.0
    %400 = vmatpush.xpose.msra.mxu0 0.0
    %401 = vmatpush.xpose.msra.mxu0 0.0
    %402 = vmatpush.xpose.msra.mxu0 0.0
    %403 = vmatpush.xpose.msra.mxu0 0.0
    %404 = vmatpush.xpose.msra.mxu0 0.0
    %405 = vmatpush.xpose.msra.mxu0 %v388
    %406 = vmatmul.f32.gmra.mxu0 %v386
    %v407 = vpop.f32.mrf.mxu0
    %v408 = vadd.f32 0.0, %v407
    %409 = vdwg.mxu0
    %410 = vrot.lane.b32.xlu0 %v254, 96
    %v411 = vpop.permute.xlu0 %410
    %v412 = vsel %vm281, %v254, 0
    %v414 = vsel %vm281, %v411, 0
    %416 = vmatpush.xpose.msra.mxu0 0.0
    %417 = vmatpush.xpose.msra.mxu0 0.0
    %418 = vmatpush.xpose.msra.mxu0 0.0
    %419 = vmatpush.xpose.msra.mxu0 0.0
    %420 = vmatpush.xpose.msra.mxu0 0.0
    %421 = vmatpush.xpose.msra.mxu0 0.0
    %422 = vmatpush.xpose.msra.mxu0 0.0
    %423 = vmatpush.xpose.msra.mxu0 0.0
    %424 = vmatpush.xpose.msra.mxu0 0.0
    %425 = vmatpush.xpose.msra.mxu0 0.0
    %426 = vmatpush.xpose.msra.mxu0 0.0
    %427 = vmatpush.xpose.msra.mxu0 0.0
    %428 = vmatpush.xpose.msra.mxu0 0.0
    %429 = vmatpush.xpose.msra.mxu0 0.0
    %430 = vmatpush.xpose.msra.mxu0 0.0
    %431 = vmatpush.xpose.msra.mxu0 %v414
    %432 = vmatmul.f32.gmra.mxu0 %v412
    %v433 = vpop.f32.mrf.mxu0
    %v434 = vadd.f32 0.0, %v433
    %435 = vdwg.mxu0
    %436 = vrot.lane.b32.xlu0 %v256, 96
    %v437 = vpop.permute.xlu0 %436
    %v438 = vsel %vm281, %v256, 0
    %v440 = vsel %vm281, %v437, 0
    %442 = vmatpush.xpose.msra.mxu0 0.0
    %443 = vmatpush.xpose.msra.mxu0 0.0
    %444 = vmatpush.xpose.msra.mxu0 0.0
    %445 = vmatpush.xpose.msra.mxu0 0.0
    %446 = vmatpush.xpose.msra.mxu0 0.0
    %447 = vmatpush.xpose.msra.mxu0 0.0
    %448 = vmatpush.xpose.msra.mxu0 0.0
    %449 = vmatpush.xpose.msra.mxu0 0.0
    %450 = vmatpush.xpose.msra.mxu0 0.0
    %451 = vmatpush.xpose.msra.mxu0 0.0
    %452 = vmatpush.xpose.msra.mxu0 0.0
    %453 = vmatpush.xpose.msra.mxu0 0.0
    %454 = vmatpush.xpose.msra.mxu0 0.0
    %455 = vmatpush.xpose.msra.mxu0 0.0
    %456 = vmatpush.xpose.msra.mxu0 0.0
    %457 = vmatpush.xpose.msra.mxu0 %v440
    %458 = vmatmul.f32.gmra.mxu0 %v438
    %v459 = vpop.f32.mrf.mxu0
    %v460 = vadd.f32 0.0, %v459
    %461 = vdwg.mxu0
    %462 = vrot.lane.b32.xlu0 %v258, 96
    %v463 = vpop.permute.xlu0 %462
    %v464 = vsel %vm281, %v258, 0
    %v466 = vsel %vm281, %v463, 0
    %468 = vmatpush.xpose.msra.mxu0 0.0
    %469 = vmatpush.xpose.msra.mxu0 0.0
    %470 = vmatpush.xpose.msra.mxu0 0.0
    %471 = vmatpush.xpose.msra.mxu0 0.0
    %472 = vmatpush.xpose.msra.mxu0 0.0
    %473 = vmatpush.xpose.msra.mxu0 0.0
    %474 = vmatpush.xpose.msra.mxu0 0.0
    %475 = vmatpush.xpose.msra.mxu0 0.0
    %476 = vmatpush.xpose.msra.mxu0 0.0
    %477 = vmatpush.xpose.msra.mxu0 0.0
    %478 = vmatpush.xpose.msra.mxu0 0.0
    %479 = vmatpush.xpose.msra.mxu0 0.0
    %480 = vmatpush.xpose.msra.mxu0 0.0
    %481 = vmatpush.xpose.msra.mxu0 0.0
    %482 = vmatpush.xpose.msra.mxu0 0.0
    %483 = vmatpush.xpose.msra.mxu0 %v466
    %484 = vmatmul.f32.gmra.mxu0 %v464
    %v485 = vpop.f32.mrf.mxu0
    %v486 = vadd.f32 0.0, %v485
    %487 = vdwg.mxu0
    %v488 = vmul.f32 %v304, 0.35355338
    %v489 = vmul.f32 %v330, 0.35355338
    %v490 = vmul.f32 %v356, 0.35355338
    %v491 = vmul.f32 %v382, 0.35355338
    %v492 = vmul.f32 %v408, 0.35355338
    %v493 = vmul.f32 %v434, 0.35355338
    %v494 = vmul.f32 %v460, 0.35355338
    %v495 = vmul.f32 %v486, 0.35355338
    %v496 = vadd.f32 %v488, %v109
    %v497 = vadd.f32 %v489, %v110
    %v498 = vadd.f32 %v490, %v109
    %v499 = vadd.f32 %v491, %v110
    %v500 = vadd.f32 %v492, %v109
    %v501 = vadd.f32 %v493, %v110
    %v502 = vadd.f32 %v494, %v109
    %v503 = vadd.f32 %v495, %v110
    %v504 = vsel %vm281, %v496, -inf
    %505 = vmax.xlane.f32.xlu0 %v504
    %v506 = vpop.xlane.xlu0 %505
    %v507 = vsel %vm281, %v497, -inf
    %508 = vmax.xlane.f32.xlu0 %v507
    %v509 = vpop.xlane.xlu0 %508
    %v510 = vsel %vm281, %v498, -inf
    %511 = vmax.xlane.f32.xlu0 %v510
    %v512 = vpop.xlane.xlu0 %511
    %v513 = vsel %vm281, %v499, -inf
    %514 = vmax.xlane.f32.xlu0 %v513
    %v515 = vpop.xlane.xlu0 %514
    %v516 = vsel %vm281, %v500, -inf
    %517 = vmax.xlane.f32.xlu0 %v516
    %v518 = vpop.xlane.xlu0 %517
    %v519 = vsel %vm281, %v501, -inf
    %520 = vmax.xlane.f32.xlu0 %v519
    %v521 = vpop.xlane.xlu0 %520
    %v522 = vsel %vm281, %v502, -inf
    %523 = vmax.xlane.f32.xlu0 %v522
    %v524 = vpop.xlane.xlu0 %523
    %v525 = vsel %vm281, %v503, -inf
    %526 = vmax.xlane.f32.xlu0 %v525
    %v527 = vpop.xlane.xlu0 %526
    %v528 = vsub.f32 %v496, %v506
    %v529 = vsub.f32 %v497, %v509
    %v530 = vsub.f32 %v498, %v512
    %v531 = vsub.f32 %v499, %v515
    %v532 = vsub.f32 %v500, %v518
    %v533 = vsub.f32 %v501, %v521
    %v534 = vsub.f32 %v502, %v524
    %v535 = vsub.f32 %v503, %v527
    %v536 = vmul.f32 %v528, 1.442695
    %v537 = vpow.pop %v536
    %v538 = vmul.f32 %v529, 1.442695
    %v539 = vpow.pop %v538
    %v540 = vmul.f32 %v530, 1.442695
    %v541 = vpow.pop %v540
    %v542 = vmul.f32 %v531, 1.442695
    %v543 = vpow.pop %v542
    %v544 = vmul.f32 %v532, 1.442695
    %v545 = vpow.pop %v544
    %v546 = vmul.f32 %v533, 1.442695
    %v547 = vpow.pop %v546
    %v548 = vmul.f32 %v534, 1.442695
    %v549 = vpow.pop %v548
    %v550 = vmul.f32 %v535, 1.442695
    %v551 = vpow.pop %v550
    %v552 = vsel %vm281, %v537, 0.0
    %553 = vadd.xlane.f32.xlu0 %v552
    %v554 = vpop.xlane.xlu0 %553
    %v555 = vsel %vm281, %v539, 0.0
    %556 = vadd.xlane.f32.xlu0 %v555
    %v557 = vpop.xlane.xlu0 %556
    %v558 = vsel %vm281, %v541, 0.0
    %559 = vadd.xlane.f32.xlu0 %v558
    %v560 = vpop.xlane.xlu0 %559
    %v561 = vsel %vm281, %v543, 0.0
    %562 = vadd.xlane.f32.xlu0 %v561
    %v563 = vpop.xlane.xlu0 %562
    %v564 = vsel %vm281, %v545, 0.0
    %565 = vadd.xlane.f32.xlu0 %v564
    %v566 = vpop.xlane.xlu0 %565
    %v567 = vsel %vm281, %v547, 0.0
    %568 = vadd.xlane.f32.xlu0 %v567
    %v569 = vpop.xlane.xlu0 %568
    %v570 = vsel %vm281, %v549, 0.0
    %571 = vadd.xlane.f32.xlu0 %v570
    %v572 = vpop.xlane.xlu0 %571
    %v573 = vsel %vm281, %v551, 0.0
    %574 = vadd.xlane.f32.xlu0 %v573
    %v575 = vpop.xlane.xlu0 %574
    %v576 = vrcp.pop %v554
    %v577 = vrcp.pop %v557
    %v578 = vrcp.pop %v560
    %v579 = vrcp.pop %v563
    %v580 = vrcp.pop %v566
    %v581 = vrcp.pop %v569
    %v582 = vrcp.pop %v572
    %v583 = vrcp.pop %v575
    %v584 = vmul.f32 %v537, %v576
    %v585 = vmul.f32 %v539, %v577
    %v586 = vmul.f32 %v541, %v578
    %v587 = vmul.f32 %v543, %v579
    %v588 = vmul.f32 %v545, %v580
    %v589 = vmul.f32 %v547, %v581
    %v590 = vmul.f32 %v549, %v582
    %v591 = vmul.f32 %v551, %v583
    %v593 = vsel %vm281, %v584, 0
    %595 = vmatpush.msra.mxu0 0.0
    %596 = vmatpush.msra.mxu0 0.0
    %597 = vmatpush.msra.mxu0 0.0
    %598 = vmatpush.msra.mxu0 0.0
    %599 = vmatpush.msra.mxu0 0.0
    %600 = vmatpush.msra.mxu0 0.0
    %601 = vmatpush.msra.mxu0 0.0
    %602 = vmatpush.msra.mxu0 0.0
    %603 = vmatpush.msra.mxu0 0.0
    %604 = vmatpush.msra.mxu0 0.0
    %605 = vmatpush.msra.mxu0 0.0
    %606 = vmatpush.msra.mxu0 0.0
    %607 = vmatpush.msra.mxu0 0.0
    %608 = vmatpush.msra.mxu0 0.0
    %609 = vmatpush.msra.mxu0 0.0
    %610 = vmatpush.msra.mxu0 %v218
    %611 = vmatmul.f32.gmra.mxu0 %v593
    %v612 = vpop.f32.mrf.mxu0
    %v613 = vadd.f32 0.0, %v612
    %614 = vdwg.mxu0
    %v616 = vsel %vm281, %v585, 0
    %618 = vmatpush.msra.mxu0 0.0
    %619 = vmatpush.msra.mxu0 0.0
    %620 = vmatpush.msra.mxu0 0.0
    %621 = vmatpush.msra.mxu0 0.0
    %622 = vmatpush.msra.mxu0 0.0
    %623 = vmatpush.msra.mxu0 0.0
    %624 = vmatpush.msra.mxu0 0.0
    %625 = vmatpush.msra.mxu0 0.0
    %626 = vmatpush.msra.mxu0 0.0
    %627 = vmatpush.msra.mxu0 0.0
    %628 = vmatpush.msra.mxu0 0.0
    %629 = vmatpush.msra.mxu0 0.0
    %630 = vmatpush.msra.mxu0 0.0
    %631 = vmatpush.msra.mxu0 0.0
    %632 = vmatpush.msra.mxu0 0.0
    %633 = vmatpush.msra.mxu0 %v221
    %634 = vmatmul.f32.gmra.mxu0 %v616
    %v635 = vpop.f32.mrf.mxu0
    %v636 = vadd.f32 0.0, %v635
    %637 = vdwg.mxu0
    %v639 = vsel %vm281, %v586, 0
    %641 = vmatpush.msra.mxu0 0.0
    %642 = vmatpush.msra.mxu0 0.0
    %643 = vmatpush.msra.mxu0 0.0
    %644 = vmatpush.msra.mxu0 0.0
    %645 = vmatpush.msra.mxu0 0.0
    %646 = vmatpush.msra.mxu0 0.0
    %647 = vmatpush.msra.mxu0 0.0
    %648 = vmatpush.msra.mxu0 0.0
    %649 = vmatpush.msra.mxu0 0.0
    %650 = vmatpush.msra.mxu0 0.0
    %651 = vmatpush.msra.mxu0 0.0
    %652 = vmatpush.msra.mxu0 0.0
    %653 = vmatpush.msra.mxu0 0.0
    %654 = vmatpush.msra.mxu0 0.0
    %655 = vmatpush.msra.mxu0 0.0
    %656 = vmatpush.msra.mxu0 %v262
    %657 = vmatmul.f32.gmra.mxu0 %v639
    %v658 = vpop.f32.mrf.mxu0
    %v659 = vadd.f32 0.0, %v658
    %660 = vdwg.mxu0
    %v662 = vsel %vm281, %v587, 0
    %664 = vmatpush.msra.mxu0 0.0
    %665 = vmatpush.msra.mxu0 0.0
    %666 = vmatpush.msra.mxu0 0.0
    %667 = vmatpush.msra.mxu0 0.0
    %668 = vmatpush.msra.mxu0 0.0
    %669 = vmatpush.msra.mxu0 0.0
    %670 = vmatpush.msra.mxu0 0.0
    %671 = vmatpush.msra.mxu0 0.0
    %672 = vmatpush.msra.mxu0 0.0
    %673 = vmatpush.msra.mxu0 0.0
    %674 = vmatpush.msra.mxu0 0.0
    %675 = vmatpush.msra.mxu0 0.0
    %676 = vmatpush.msra.mxu0 0.0
    %677 = vmatpush.msra.mxu0 0.0
    %678 = vmatpush.msra.mxu0 0.0
    %679 = vmatpush.msra.mxu0 %v264
    %680 = vmatmul.f32.gmra.mxu0 %v662
    %v681 = vpop.f32.mrf.mxu0
    %v682 = vadd.f32 0.0, %v681
    %683 = vdwg.mxu0
    %v685 = vsel %vm281, %v588, 0
    %687 = vmatpush.msra.mxu0 0.0
    %688 = vmatpush.msra.mxu0 0.0
    %689 = vmatpush.msra.mxu0 0.0
    %690 = vmatpush.msra.mxu0 0.0
    %691 = vmatpush.msra.mxu0 0.0
    %692 = vmatpush.msra.mxu0 0.0
    %693 = vmatpush.msra.mxu0 0.0
    %694 = vmatpush.msra.mxu0 0.0
    %695 = vmatpush.msra.mxu0 0.0
    %696 = vmatpush.msra.mxu0 0.0
    %697 = vmatpush.msra.mxu0 0.0
    %698 = vmatpush.msra.mxu0 0.0
    %699 = vmatpush.msra.mxu0 0.0
    %700 = vmatpush.msra.mxu0 0.0
    %701 = vmatpush.msra.mxu0 0.0
    %702 = vmatpush.msra.mxu0 %v268
    %703 = vmatmul.f32.gmra.mxu0 %v685
    %v704 = vpop.f32.mrf.mxu0
    %v705 = vadd.f32 0.0, %v704
    %706 = vdwg.mxu0
    %v708 = vsel %vm281, %v589, 0
    %710 = vmatpush.msra.mxu0 0.0
    %711 = vmatpush.msra.mxu0 0.0
    %712 = vmatpush.msra.mxu0 0.0
    %713 = vmatpush.msra.mxu0 0.0
    %714 = vmatpush.msra.mxu0 0.0
    %715 = vmatpush.msra.mxu0 0.0
    %716 = vmatpush.msra.mxu0 0.0
    %717 = vmatpush.msra.mxu0 0.0
    %718 = vmatpush.msra.mxu0 0.0
    %719 = vmatpush.msra.mxu0 0.0
    %720 = vmatpush.msra.mxu0 0.0
    %721 = vmatpush.msra.mxu0 0.0
    %722 = vmatpush.msra.mxu0 0.0
    %723 = vmatpush.msra.mxu0 0.0
    %724 = vmatpush.msra.mxu0 0.0
    %725 = vmatpush.msra.mxu0 %v270
    %726 = vmatmul.f32.gmra.mxu0 %v708
    %v727 = vpop.f32.mrf.mxu0
    %v728 = vadd.f32 0.0, %v727
    %729 = vdwg.mxu0
    %v731 = vsel %vm281, %v590, 0
    %733 = vmatpush.msra.mxu0 0.0
    %734 = vmatpush.msra.mxu0 0.0
    %735 = vmatpush.msra.mxu0 0.0
    %736 = vmatpush.msra.mxu0 0.0
    %737 = vmatpush.msra.mxu0 0.0
    %738 = vmatpush.msra.mxu0 0.0
    %739 = vmatpush.msra.mxu0 0.0
    %740 = vmatpush.msra.mxu0 0.0
    %741 = vmatpush.msra.mxu0 0.0
    %742 = vmatpush.msra.mxu0 0.0
    %743 = vmatpush.msra.mxu0 0.0
    %744 = vmatpush.msra.mxu0 0.0
    %745 = vmatpush.msra.mxu0 0.0
    %746 = vmatpush.msra.mxu0 0.0
    %747 = vmatpush.msra.mxu0 0.0
    %748 = vmatpush.msra.mxu0 %v274
    %749 = vmatmul.f32.gmra.mxu0 %v731
    %v750 = vpop.f32.mrf.mxu0
    %v751 = vadd.f32 0.0, %v750
    %752 = vdwg.mxu0
    %v754 = vsel %vm281, %v591, 0
    %756 = vmatpush.msra.mxu0 0.0
    %757 = vmatpush.msra.mxu0 0.0
    %758 = vmatpush.msra.mxu0 0.0
    %759 = vmatpush.msra.mxu0 0.0
    %760 = vmatpush.msra.mxu0 0.0
    %761 = vmatpush.msra.mxu0 0.0
    %762 = vmatpush.msra.mxu0 0.0
    %763 = vmatpush.msra.mxu0 0.0
    %764 = vmatpush.msra.mxu0 0.0
    %765 = vmatpush.msra.mxu0 0.0
    %766 = vmatpush.msra.mxu0 0.0
    %767 = vmatpush.msra.mxu0 0.0
    %768 = vmatpush.msra.mxu0 0.0
    %769 = vmatpush.msra.mxu0 0.0
    %770 = vmatpush.msra.mxu0 0.0
    %771 = vmatpush.msra.mxu0 %v276
    %772 = vmatmul.f32.gmra.mxu0 %v754
    %v773 = vpop.f32.mrf.mxu0
    %v774 = vadd.f32 0.0, %v773
    %775 = vdwg.mxu0
    %v776 = vld [vmem:[%s7] sm:$0xff]
    %v777 = vld [vmem:[%s7 + $0x8] sm:$0xff]
    %v778 = vld [vmem:[%s7 + $0x10] sm:$0xff]
    %v779 = vld [vmem:[%s7 + $0x18] sm:$0xff]
    %v781 = vsel %vm281, %v613, 0
    %v784 = vsel %vm281, %v636, 0
    %786 = vmatpush.msra.mxu0 0.0
    %787 = vmatpush.msra.mxu0 0.0
    %788 = vmatpush.msra.mxu0 0.0
    %789 = vmatpush.msra.mxu0 0.0
    %790 = vmatpush.msra.mxu0 0.0
    %791 = vmatpush.msra.mxu0 0.0
    %792 = vmatpush.msra.mxu0 0.0
    %793 = vmatpush.msra.mxu0 0.0
    %794 = vmatpush.msra.mxu0 0.0
    %795 = vmatpush.msra.mxu0 0.0
    %796 = vmatpush.msra.mxu0 0.0
    %797 = vmatpush.msra.mxu0 0.0
    %798 = vmatpush.msra.mxu0 0.0
    %799 = vmatpush.msra.mxu0 0.0
    %800 = vmatpush.msra.mxu0 0.0
    %801 = vmatpush.msra.mxu0 %v776
    %802 = vmatmul.f32.gmra.mxu0 %v781
    %v803 = vpop.f32.mrf.mxu0
    %v804 = vadd.f32 0.0, %v803
    %805 = vmatmul.f32.gmra.mxu0 %v784
    %v806 = vpop.f32.mrf.mxu0
    %v807 = vadd.f32 0.0, %v806
    %808 = vdwg.mxu0
    %v809 = vadd.f32 %v91, %v804
    %v810 = vadd.f32 %v94, %v807
    %v812 = vsel %vm281, %v659, 0
    %v815 = vsel %vm281, %v682, 0
    %817 = vmatpush.msra.mxu0 0.0
    %818 = vmatpush.msra.mxu0 0.0
    %819 = vmatpush.msra.mxu0 0.0
    %820 = vmatpush.msra.mxu0 0.0
    %821 = vmatpush.msra.mxu0 0.0
    %822 = vmatpush.msra.mxu0 0.0
    %823 = vmatpush.msra.mxu0 0.0
    %824 = vmatpush.msra.mxu0 0.0
    %825 = vmatpush.msra.mxu0 0.0
    %826 = vmatpush.msra.mxu0 0.0
    %827 = vmatpush.msra.mxu0 0.0
    %828 = vmatpush.msra.mxu0 0.0
    %829 = vmatpush.msra.mxu0 0.0
    %830 = vmatpush.msra.mxu0 0.0
    %831 = vmatpush.msra.mxu0 0.0
    %832 = vmatpush.msra.mxu0 %v777
    %833 = vmatmul.f32.gmra.mxu0 %v812
    %v834 = vpop.f32.mrf.mxu0
    %v835 = vadd.f32 0.0, %v834
    %836 = vmatmul.f32.gmra.mxu0 %v815
    %v837 = vpop.f32.mrf.mxu0
    %v838 = vadd.f32 0.0, %v837
    %839 = vdwg.mxu0
    %v840 = vadd.f32 %v809, %v835
    %v841 = vadd.f32 %v810, %v838
    %v843 = vsel %vm281, %v705, 0
    %v846 = vsel %vm281, %v728, 0
    %848 = vmatpush.msra.mxu0 0.0
    %849 = vmatpush.msra.mxu0 0.0
    %850 = vmatpush.msra.mxu0 0.0
    %851 = vmatpush.msra.mxu0 0.0
    %852 = vmatpush.msra.mxu0 0.0
    %853 = vmatpush.msra.mxu0 0.0
    %854 = vmatpush.msra.mxu0 0.0
    %855 = vmatpush.msra.mxu0 0.0
    %856 = vmatpush.msra.mxu0 0.0
    %857 = vmatpush.msra.mxu0 0.0
    %858 = vmatpush.msra.mxu0 0.0
    %859 = vmatpush.msra.mxu0 0.0
    %860 = vmatpush.msra.mxu0 0.0
    %861 = vmatpush.msra.mxu0 0.0
    %862 = vmatpush.msra.mxu0 0.0
    %863 = vmatpush.msra.mxu0 %v778
    %864 = vmatmul.f32.gmra.mxu0 %v843
    %v865 = vpop.f32.mrf.mxu0
    %v866 = vadd.f32 0.0, %v865
    %867 = vmatmul.f32.gmra.mxu0 %v846
    %v868 = vpop.f32.mrf.mxu0
    %v869 = vadd.f32 0.0, %v868
    %870 = vdwg.mxu0
    %v871 = vadd.f32 %v840, %v866
    %v872 = vadd.f32 %v841, %v869
    %v874 = vsel %vm281, %v751, 0
    %v877 = vsel %vm281, %v774, 0
    %879 = vmatpush.msra.mxu0 0.0
    %880 = vmatpush.msra.mxu0 0.0
    %881 = vmatpush.msra.mxu0 0.0
    %882 = vmatpush.msra.mxu0 0.0
    %883 = vmatpush.msra.mxu0 0.0
    %884 = vmatpush.msra.mxu0 0.0
    %885 = vmatpush.msra.mxu0 0.0
    %886 = vmatpush.msra.mxu0 0.0
    %887 = vmatpush.msra.mxu0 0.0
    %888 = vmatpush.msra.mxu0 0.0
    %889 = vmatpush.msra.mxu0 0.0
    %890 = vmatpush.msra.mxu0 0.0
    %891 = vmatpush.msra.mxu0 0.0
    %892 = vmatpush.msra.mxu0 0.0
    %893 = vmatpush.msra.mxu0 0.0
    %894 = vmatpush.msra.mxu0 %v779
    %895 = vmatmul.f32.gmra.mxu0 %v874
    %v896 = vpop.f32.mrf.mxu0
    %v897 = vadd.f32 0.0, %v896
    %898 = vmatmul.f32.gmra.mxu0 %v877
    %v899 = vpop.f32.mrf.mxu0
    %v900 = vadd.f32 0.0, %v899
    %901 = vdwg.mxu0
    %v902 = vadd.f32 %v871, %v897
    %v903 = vadd.f32 %v872, %v900
    %v904 = vld [vmem:[%s8] sm:$0x1]
    %v905 = vmul.f32 %v902, %v902
    %v906 = vmul.f32 %v903, %v903
    %v907 = vsel %vm118, %v905, 0.0
    %908 = vadd.xlane.f32.xlu0 %v907
    %v909 = vpop.xlane.xlu0 %908
    %v910 = vsel %vm118, %v906, 0.0
    %911 = vadd.xlane.f32.xlu0 %v910
    %v912 = vpop.xlane.xlu0 %911
    %v913 = vmul.f32 %v909, %v131
    %v914 = vmul.f32 %v912, %v131
    %v915 = vadd.f32 %v913, 1e-05
    %v916 = vadd.f32 %v914, 1e-05
    %v917 = vrsqrt.pop %v915
    %v918 = vmul.f32 %v917, %v915
    %v919 = vmul.f32 %v918, %v917
    %v920 = vmul.f32 0.5, %v919
    %v921 = vsub.f32 1.5, %v920
    %v922 = vmul.f32 %v917, %v921
    %vm923 = vweird.f32 %v915
    %vm924 = vweird.f32 %v917
    %vm925 = vmor %vm923, %vm924
    %v926 = vsel %vm925, %v917, %v922
    %v927 = vrsqrt.pop %v916
    %v928 = vmul.f32 %v927, %v916
    %v929 = vmul.f32 %v928, %v927
    %v930 = vmul.f32 0.5, %v929
    %v931 = vsub.f32 1.5, %v930
    %v932 = vmul.f32 %v927, %v931
    %vm933 = vweird.f32 %v916
    %vm934 = vweird.f32 %v927
    %vm935 = vmor %vm933, %vm934
    %v936 = vsel %vm935, %v927, %v932
    %v937 = vmul.f32 %v902, %v926
    %v938 = vmul.f32 %v903, %v936
    %v940 = vperm.slane %v904, 0
    %v942 = vmul.f32 %v937, %v940
    %v943 = vmul.f32 %v938, %v940
    %v944 = vld [vmem:[%s9] sm:$0xff]
    %v945 = vld [vmem:[%s9 + $0x8] sm:$0xff]
    %v946 = vld [vmem:[%s9 + $0x10] sm:$0xff]
    %v947 = vld [vmem:[%s9 + $0x18] sm:$0xff]
    %v949 = vsel %vm118, %v942, 0
    %v952 = vsel %vm118, %v943, 0
    %954 = vmatpush.msra.mxu0 0.0
    %955 = vmatpush.msra.mxu0 0.0
    %956 = vmatpush.msra.mxu0 0.0
    %957 = vmatpush.msra.mxu0 0.0
    %958 = vmatpush.msra.mxu0 0.0
    %959 = vmatpush.msra.mxu0 0.0
    %960 = vmatpush.msra.mxu0 0.0
    %961 = vmatpush.msra.mxu0 0.0
    %962 = vmatpush.msra.mxu0 0.0
    %963 = vmatpush.msra.mxu0 0.0
    %964 = vmatpush.msra.mxu0 0.0
    %965 = vmatpush.msra.mxu0 0.0
    %966 = vmatpush.msra.mxu0 %v947
    %967 = vmatpush.msra.mxu0 %v946
    %968 = vmatpush.msra.mxu0 %v945
    %969 = vmatpush.msra.mxu0 %v944
    %970 = vmatmul.f32.gmra.mxu0 %v949
    %v971 = vpop.f32.mrf.mxu0
    %v972 = vadd.f32 0.0, %v971
    %973 = vmatmul.f32.gmra.mxu0 %v952
    %v974 = vpop.f32.mrf.mxu0
    %v975 = vadd.f32 0.0, %v974
    %976 = vdwg.mxu0
    %v977 = vxor.u32 %v972, 2147483648
    %v978 = vxor.u32 %v975, 2147483648
    %v979 = vmul.f32 %v977, 1.442695
    %v980 = vpow.pop %v979
    %v981 = vmul.f32 %v978, 1.442695
    %v982 = vpow.pop %v981
    %v983 = vadd.f32 %v980, 1.0
    %v984 = vadd.f32 %v982, 1.0
    %v985 = vrcp.pop %v983
    %v986 = vmul.f32 %v983, %v985
    %v987 = vsub.f32 1.0, %v986
    %v988 = vmul.f32 %v985, %v987
    %v989 = vadd.f32 %v985, %v988
    %vm990 = vweird.f32 %v983
    %vm991 = vweird.f32 %v985
    %vm992 = vmor %vm990, %vm991
    %v993 = vsel %vm992, %v985, %v989
    %v994 = vand.u32 2147483647, %v983
    %vm995 = vcmp.eq.f32.partialorder %v994, 8.507059e+37
    %v996 = vand.u32 %v983, 2147483648
    %v997 = vor.u32 1.1754944e-38, %v996
    %v998 = vsel %vm995, %v997, %v993
    %v999 = vmul.f32 1.0, %v998
    %v1000 = vrcp.pop %v984
    %v1001 = vmul.f32 %v984, %v1000
    %v1002 = vsub.f32 1.0, %v1001
    %v1003 = vmul.f32 %v1000, %v1002
    %v1004 = vadd.f32 %v1000, %v1003
    %vm1005 = vweird.f32 %v984
    %vm1006 = vweird.f32 %v1000
    %vm1007 = vmor %vm1005, %vm1006
    %v1008 = vsel %vm1007, %v1000, %v1004
    %v1009 = vand.u32 2147483647, %v984
    %vm1010 = vcmp.eq.f32.partialorder %v1009, 8.507059e+37
    %v1011 = vand.u32 %v984, 2147483648
    %v1012 = vor.u32 1.1754944e-38, %v1011
    %v1013 = vsel %vm1010, %v1012, %v1008
    %v1014 = vmul.f32 1.0, %v1013
    %v1015 = vmul.f32 %v972, %v999
    %v1016 = vmul.f32 %v975, %v1014
    %1019 = vrot.lane.b32.xlu0 %v972, 64
    %v1020 = vpop.permute.xlu0 %1019
    %1021 = vrot.lane.b32.xlu0 %v975, 64
    %v1022 = vpop.permute.xlu0 %1021
    %v1025 = vmul.f32 %v1015, %v1020
    %v1026 = vmul.f32 %v1016, %v1022
    %v1027 = vld [vmem:[%s10] sm:$0xff]
    %v1028 = vld [vmem:[%s10 + $0x8] sm:$0xff]
    %v1029 = vld [vmem:[%s10 + $0x10] sm:$0xff]
    %v1030 = vld [vmem:[%s10 + $0x18] sm:$0xff]
    %v1031 = vld [vmem:[%s10 + $0x20] sm:$0xff]
    %v1032 = vld [vmem:[%s10 + $0x28] sm:$0xff]
    %v1033 = vld [vmem:[%s10 + $0x30] sm:$0xff]
    %v1034 = vld [vmem:[%s10 + $0x38] sm:$0xff]
    %v1036 = vsel %vm66, %v1025, 0
    %v1039 = vsel %vm66, %v1026, 0
    %1041 = vmatpush.msra.mxu0 0.0
    %1042 = vmatpush.msra.mxu0 0.0
    %1043 = vmatpush.msra.mxu0 0.0
    %1044 = vmatpush.msra.mxu0 0.0
    %1045 = vmatpush.msra.mxu0 0.0
    %1046 = vmatpush.msra.mxu0 0.0
    %1047 = vmatpush.msra.mxu0 0.0
    %1048 = vmatpush.msra.mxu0 0.0
    %1049 = vmatpush.msra.mxu0 %v1034
    %1050 = vmatpush.msra.mxu0 %v1033
    %1051 = vmatpush.msra.mxu0 %v1032
    %1052 = vmatpush.msra.mxu0 %v1031
    %1053 = vmatpush.msra.mxu0 %v1030
    %1054 = vmatpush.msra.mxu0 %v1029
    %1055 = vmatpush.msra.mxu0 %v1028
    %1056 = vmatpush.msra.mxu0 %v1027
    %1057 = vmatmul.f32.gmra.mxu0 %v1036
    %v1058 = vpop.f32.mrf.mxu0
    %v1059 = vadd.f32 0.0, %v1058
    %1060 = vmatmul.f32.gmra.mxu0 %v1039
    %v1061 = vpop.f32.mrf.mxu0
    %v1062 = vadd.f32 0.0, %v1061
    %1063 = vdwg.mxu0
    %v1064 = vadd.f32 %v902, %v1059
    %v1065 = vadd.f32 %v903, %v1062
    %s1066 = scalar_lea.vmem %s5, 1
    %v1067 = vld [vmem:[%s1066] sm:$0x1]
    %v1068 = vmul.f32 %v1064, %v1064
    %v1069 = vmul.f32 %v1065, %v1065
    %v1070 = vsel %vm118, %v1068, 0.0
    %1071 = vadd.xlane.f32.xlu0 %v1070
    %v1072 = vpop.xlane.xlu0 %1071
    %v1073 = vsel %vm118, %v1069, 0.0
    %1074 = vadd.xlane.f32.xlu0 %v1073
    %v1075 = vpop.xlane.xlu0 %1074
    %v1076 = vmul.f32 %v1072, %v131
    %v1077 = vmul.f32 %v1075, %v131
    %v1078 = vadd.f32 %v1076, 1e-05
    %v1079 = vadd.f32 %v1077, 1e-05
    %v1080 = vrsqrt.pop %v1078
    %v1081 = vmul.f32 %v1080, %v1078
    %v1082 = vmul.f32 %v1081, %v1080
    %v1083 = vmul.f32 0.5, %v1082
    %v1084 = vsub.f32 1.5, %v1083
    %v1085 = vmul.f32 %v1080, %v1084
    %vm1086 = vweird.f32 %v1078
    %vm1087 = vweird.f32 %v1080
    %vm1088 = vmor %vm1086, %vm1087
    %v1089 = vsel %vm1088, %v1080, %v1085
    %v1090 = vrsqrt.pop %v1079
    %v1091 = vmul.f32 %v1090, %v1079
    %v1092 = vmul.f32 %v1091, %v1090
    %v1093 = vmul.f32 0.5, %v1092
    %v1094 = vsub.f32 1.5, %v1093
    %v1095 = vmul.f32 %v1090, %v1094
    %vm1096 = vweird.f32 %v1079
    %vm1097 = vweird.f32 %v1090
    %vm1098 = vmor %vm1096, %vm1097
    %v1099 = vsel %vm1098, %v1090, %v1095
    %v1100 = vmul.f32 %v1064, %v1089
    %v1101 = vmul.f32 %v1065, %v1099
    %v1103 = vperm.slane %v1067, 0
    %v1105 = vmul.f32 %v1100, %v1103
    %v1106 = vmul.f32 %v1101, %v1103
    %s1107 = scalar_lea.vmem %s6, 64
    %v1108 = vld [vmem:[%s1107] sm:$0xff]
    %v1109 = vld [vmem:[%s1107 + $0x8] sm:$0xff]
    %v1110 = vld [vmem:[%s1107 + $0x10] sm:$0xff]
    %v1111 = vld [vmem:[%s1107 + $0x18] sm:$0xff]
    %v1112 = vld [vmem:[%s1107 + $0x20] sm:$0xff]
    %v1113 = vld [vmem:[%s1107 + $0x28] sm:$0xff]
    %v1114 = vld [vmem:[%s1107 + $0x30] sm:$0xff]
    %v1115 = vld [vmem:[%s1107 + $0x38] sm:$0xff]
    %v1117 = vsel %vm118, %v1105, 0
    %v1120 = vsel %vm118, %v1106, 0
    %1122 = vmatpush.msra.mxu0 0.0
    %1123 = vmatpush.msra.mxu0 0.0
    %1124 = vmatpush.msra.mxu0 0.0
    %1125 = vmatpush.msra.mxu0 0.0
    %1126 = vmatpush.msra.mxu0 0.0
    %1127 = vmatpush.msra.mxu0 0.0
    %1128 = vmatpush.msra.mxu0 0.0
    %1129 = vmatpush.msra.mxu0 0.0
    %1130 = vmatpush.msra.mxu0 0.0
    %1131 = vmatpush.msra.mxu0 0.0
    %1132 = vmatpush.msra.mxu0 0.0
    %1133 = vmatpush.msra.mxu0 0.0
    %1134 = vmatpush.msra.mxu0 %v1114
    %1135 = vmatpush.msra.mxu0 %v1112
    %1136 = vmatpush.msra.mxu0 %v1110
    %1137 = vmatpush.msra.mxu0 %v1108
    %1138 = vmatmul.f32.gmra.mxu0 %v1117
    %v1139 = vpop.f32.mrf.mxu0
    %v1140 = vadd.f32 0.0, %v1139
    %1141 = vmatmul.f32.gmra.mxu0 %v1120
    %v1142 = vpop.f32.mrf.mxu0
    %v1143 = vadd.f32 0.0, %v1142
    %1144 = vdwg.mxu0
    %1145 = vmatpush.msra.mxu0 0.0
    %1146 = vmatpush.msra.mxu0 0.0
    %1147 = vmatpush.msra.mxu0 0.0
    %1148 = vmatpush.msra.mxu0 0.0
    %1149 = vmatpush.msra.mxu0 0.0
    %1150 = vmatpush.msra.mxu0 0.0
    %1151 = vmatpush.msra.mxu0 0.0
    %1152 = vmatpush.msra.mxu0 0.0
    %1153 = vmatpush.msra.mxu0 0.0
    %1154 = vmatpush.msra.mxu0 0.0
    %1155 = vmatpush.msra.mxu0 0.0
    %1156 = vmatpush.msra.mxu0 0.0
    %1157 = vmatpush.msra.mxu0 %v1115
    %1158 = vmatpush.msra.mxu0 %v1113
    %1159 = vmatpush.msra.mxu0 %v1111
    %1160 = vmatpush.msra.mxu0 %v1109
    %1161 = vmatmul.f32.gmra.mxu0 %v1117
    %v1162 = vpop.f32.mrf.mxu0
    %v1163 = vadd.f32 0.0, %v1162
    %1164 = vmatmul.f32.gmra.mxu0 %v1120
    %v1165 = vpop.f32.mrf.mxu0
    %v1166 = vadd.f32 0.0, %v1165
    %1167 = vdwg.mxu0
    %v1168 = vmul.f32 %v1140, %v111
    %v1169 = vmul.f32 %v1143, %v112
    %v1170 = vmul.f32 %v1140, %v228
    %v1171 = vmul.f32 %v1143, %v230
    %1174 = vrot.lane.b32.xlu0 %v1170, 64
    %v1175 = vpop.permute.xlu0 %1174
    %1176 = vrot.lane.b32.xlu0 %v1171, 64
    %v1177 = vpop.permute.xlu0 %1176
    %v1180 = vadd.f32 %v1168, %v1175
    %v1181 = vadd.f32 %v1169, %v1177
    %1184 = vrot.lane.b32.xlu0 %v1180, 120
    %v1185 = vpop.permute.xlu0 %1184
    %1186 = vrot.lane.b32.xlu0 %v1181, 120
    %v1187 = vpop.permute.xlu0 %1186
    %1188 = vrot.lane.b32.xlu0 %v1180, 112
    %v1189 = vpop.permute.xlu0 %1188
    %1190 = vrot.lane.b32.xlu0 %v1181, 112
    %v1191 = vpop.permute.xlu0 %1190
    %1192 = vrot.lane.b32.xlu0 %v1180, 104
    %v1193 = vpop.permute.xlu0 %1192
    %1194 = vrot.lane.b32.xlu0 %v1181, 104
    %v1195 = vpop.permute.xlu0 %1194
    %1198 = vrot.lane.b32.xlu0 %v1163, 120
    %v1199 = vpop.permute.xlu0 %1198
    %1200 = vrot.lane.b32.xlu0 %v1166, 120
    %v1201 = vpop.permute.xlu0 %1200
    %1204 = vrot.lane.b32.xlu0 %v1163, 112
    %v1205 = vpop.permute.xlu0 %1204
    %1206 = vrot.lane.b32.xlu0 %v1166, 112
    %v1207 = vpop.permute.xlu0 %1206
    %1210 = vrot.lane.b32.xlu0 %v1163, 104
    %v1211 = vpop.permute.xlu0 %1210
    %1212 = vrot.lane.b32.xlu0 %v1166, 104
    %v1213 = vpop.permute.xlu0 %1212
    %1216 = vrot.lane.b32.xlu0 %v1180, 96
    %v1217 = vpop.permute.xlu0 %1216
    %v1218 = vsel %vm281, %v1180, 0
    %v1220 = vsel %vm281, %v1217, 0
    %1222 = vmatpush.xpose.msra.mxu0 0.0
    %1223 = vmatpush.xpose.msra.mxu0 0.0
    %1224 = vmatpush.xpose.msra.mxu0 0.0
    %1225 = vmatpush.xpose.msra.mxu0 0.0
    %1226 = vmatpush.xpose.msra.mxu0 0.0
    %1227 = vmatpush.xpose.msra.mxu0 0.0
    %1228 = vmatpush.xpose.msra.mxu0 0.0
    %1229 = vmatpush.xpose.msra.mxu0 0.0
    %1230 = vmatpush.xpose.msra.mxu0 0.0
    %1231 = vmatpush.xpose.msra.mxu0 0.0
    %1232 = vmatpush.xpose.msra.mxu0 0.0
    %1233 = vmatpush.xpose.msra.mxu0 0.0
    %1234 = vmatpush.xpose.msra.mxu0 0.0
    %1235 = vmatpush.xpose.msra.mxu0 0.0
    %1236 = vmatpush.xpose.msra.mxu0 0.0
    %1237 = vmatpush.xpose.msra.mxu0 %v1220
    %1238 = vmatmul.f32.gmra.mxu0 %v1218
    %v1239 = vpop.f32.mrf.mxu0
    %v1240 = vadd.f32 0.0, %v1239
    %1241 = vdwg.mxu0
    %1242 = vrot.lane.b32.xlu0 %v1181, 96
    %v1243 = vpop.permute.xlu0 %1242
    %v1244 = vsel %vm281, %v1181, 0
    %v1246 = vsel %vm281, %v1243, 0
    %1248 = vmatpush.xpose.msra.mxu0 0.0
    %1249 = vmatpush.xpose.msra.mxu0 0.0
    %1250 = vmatpush.xpose.msra.mxu0 0.0
    %1251 = vmatpush.xpose.msra.mxu0 0.0
    %1252 = vmatpush.xpose.msra.mxu0 0.0
    %1253 = vmatpush.xpose.msra.mxu0 0.0
    %1254 = vmatpush.xpose.msra.mxu0 0.0
    %1255 = vmatpush.xpose.msra.mxu0 0.0
    %1256 = vmatpush.xpose.msra.mxu0 0.0
    %1257 = vmatpush.xpose.msra.mxu0 0.0
    %1258 = vmatpush.xpose.msra.mxu0 0.0
    %1259 = vmatpush.xpose.msra.mxu0 0.0
    %1260 = vmatpush.xpose.msra.mxu0 0.0
    %1261 = vmatpush.xpose.msra.mxu0 0.0
    %1262 = vmatpush.xpose.msra.mxu0 0.0
    %1263 = vmatpush.xpose.msra.mxu0 %v1246
    %1264 = vmatmul.f32.gmra.mxu0 %v1244
    %v1265 = vpop.f32.mrf.mxu0
    %v1266 = vadd.f32 0.0, %v1265
    %1267 = vdwg.mxu0
    %1268 = vrot.lane.b32.xlu0 %v1185, 96
    %v1269 = vpop.permute.xlu0 %1268
    %v1270 = vsel %vm281, %v1185, 0
    %v1272 = vsel %vm281, %v1269, 0
    %1274 = vmatpush.xpose.msra.mxu0 0.0
    %1275 = vmatpush.xpose.msra.mxu0 0.0
    %1276 = vmatpush.xpose.msra.mxu0 0.0
    %1277 = vmatpush.xpose.msra.mxu0 0.0
    %1278 = vmatpush.xpose.msra.mxu0 0.0
    %1279 = vmatpush.xpose.msra.mxu0 0.0
    %1280 = vmatpush.xpose.msra.mxu0 0.0
    %1281 = vmatpush.xpose.msra.mxu0 0.0
    %1282 = vmatpush.xpose.msra.mxu0 0.0
    %1283 = vmatpush.xpose.msra.mxu0 0.0
    %1284 = vmatpush.xpose.msra.mxu0 0.0
    %1285 = vmatpush.xpose.msra.mxu0 0.0
    %1286 = vmatpush.xpose.msra.mxu0 0.0
    %1287 = vmatpush.xpose.msra.mxu0 0.0
    %1288 = vmatpush.xpose.msra.mxu0 0.0
    %1289 = vmatpush.xpose.msra.mxu0 %v1272
    %1290 = vmatmul.f32.gmra.mxu0 %v1270
    %v1291 = vpop.f32.mrf.mxu0
    %v1292 = vadd.f32 0.0, %v1291
    %1293 = vdwg.mxu0
    %1294 = vrot.lane.b32.xlu0 %v1187, 96
    %v1295 = vpop.permute.xlu0 %1294
    %v1296 = vsel %vm281, %v1187, 0
    %v1298 = vsel %vm281, %v1295, 0
    %1300 = vmatpush.xpose.msra.mxu0 0.0
    %1301 = vmatpush.xpose.msra.mxu0 0.0
    %1302 = vmatpush.xpose.msra.mxu0 0.0
    %1303 = vmatpush.xpose.msra.mxu0 0.0
    %1304 = vmatpush.xpose.msra.mxu0 0.0
    %1305 = vmatpush.xpose.msra.mxu0 0.0
    %1306 = vmatpush.xpose.msra.mxu0 0.0
    %1307 = vmatpush.xpose.msra.mxu0 0.0
    %1308 = vmatpush.xpose.msra.mxu0 0.0
    %1309 = vmatpush.xpose.msra.mxu0 0.0
    %1310 = vmatpush.xpose.msra.mxu0 0.0
    %1311 = vmatpush.xpose.msra.mxu0 0.0
    %1312 = vmatpush.xpose.msra.mxu0 0.0
    %1313 = vmatpush.xpose.msra.mxu0 0.0
    %1314 = vmatpush.xpose.msra.mxu0 0.0
    %1315 = vmatpush.xpose.msra.mxu0 %v1298
    %1316 = vmatmul.f32.gmra.mxu0 %v1296
    %v1317 = vpop.f32.mrf.mxu0
    %v1318 = vadd.f32 0.0, %v1317
    %1319 = vdwg.mxu0
    %1320 = vrot.lane.b32.xlu0 %v1189, 96
    %v1321 = vpop.permute.xlu0 %1320
    %v1322 = vsel %vm281, %v1189, 0
    %v1324 = vsel %vm281, %v1321, 0
    %1326 = vmatpush.xpose.msra.mxu0 0.0
    %1327 = vmatpush.xpose.msra.mxu0 0.0
    %1328 = vmatpush.xpose.msra.mxu0 0.0
    %1329 = vmatpush.xpose.msra.mxu0 0.0
    %1330 = vmatpush.xpose.msra.mxu0 0.0
    %1331 = vmatpush.xpose.msra.mxu0 0.0
    %1332 = vmatpush.xpose.msra.mxu0 0.0
    %1333 = vmatpush.xpose.msra.mxu0 0.0
    %1334 = vmatpush.xpose.msra.mxu0 0.0
    %1335 = vmatpush.xpose.msra.mxu0 0.0
    %1336 = vmatpush.xpose.msra.mxu0 0.0
    %1337 = vmatpush.xpose.msra.mxu0 0.0
    %1338 = vmatpush.xpose.msra.mxu0 0.0
    %1339 = vmatpush.xpose.msra.mxu0 0.0
    %1340 = vmatpush.xpose.msra.mxu0 0.0
    %1341 = vmatpush.xpose.msra.mxu0 %v1324
    %1342 = vmatmul.f32.gmra.mxu0 %v1322
    %v1343 = vpop.f32.mrf.mxu0
    %v1344 = vadd.f32 0.0, %v1343
    %1345 = vdwg.mxu0
    %1346 = vrot.lane.b32.xlu0 %v1191, 96
    %v1347 = vpop.permute.xlu0 %1346
    %v1348 = vsel %vm281, %v1191, 0
    %v1350 = vsel %vm281, %v1347, 0
    %1352 = vmatpush.xpose.msra.mxu0 0.0
    %1353 = vmatpush.xpose.msra.mxu0 0.0
    %1354 = vmatpush.xpose.msra.mxu0 0.0
    %1355 = vmatpush.xpose.msra.mxu0 0.0
    %1356 = vmatpush.xpose.msra.mxu0 0.0
    %1357 = vmatpush.xpose.msra.mxu0 0.0
    %1358 = vmatpush.xpose.msra.mxu0 0.0
    %1359 = vmatpush.xpose.msra.mxu0 0.0
    %1360 = vmatpush.xpose.msra.mxu0 0.0
    %1361 = vmatpush.xpose.msra.mxu0 0.0
    %1362 = vmatpush.xpose.msra.mxu0 0.0
    %1363 = vmatpush.xpose.msra.mxu0 0.0
    %1364 = vmatpush.xpose.msra.mxu0 0.0
    %1365 = vmatpush.xpose.msra.mxu0 0.0
    %1366 = vmatpush.xpose.msra.mxu0 0.0
    %1367 = vmatpush.xpose.msra.mxu0 %v1350
    %1368 = vmatmul.f32.gmra.mxu0 %v1348
    %v1369 = vpop.f32.mrf.mxu0
    %v1370 = vadd.f32 0.0, %v1369
    %1371 = vdwg.mxu0
    %1372 = vrot.lane.b32.xlu0 %v1193, 96
    %v1373 = vpop.permute.xlu0 %1372
    %v1374 = vsel %vm281, %v1193, 0
    %v1376 = vsel %vm281, %v1373, 0
    %1378 = vmatpush.xpose.msra.mxu0 0.0
    %1379 = vmatpush.xpose.msra.mxu0 0.0
    %1380 = vmatpush.xpose.msra.mxu0 0.0
    %1381 = vmatpush.xpose.msra.mxu0 0.0
    %1382 = vmatpush.xpose.msra.mxu0 0.0
    %1383 = vmatpush.xpose.msra.mxu0 0.0
    %1384 = vmatpush.xpose.msra.mxu0 0.0
    %1385 = vmatpush.xpose.msra.mxu0 0.0
    %1386 = vmatpush.xpose.msra.mxu0 0.0
    %1387 = vmatpush.xpose.msra.mxu0 0.0
    %1388 = vmatpush.xpose.msra.mxu0 0.0
    %1389 = vmatpush.xpose.msra.mxu0 0.0
    %1390 = vmatpush.xpose.msra.mxu0 0.0
    %1391 = vmatpush.xpose.msra.mxu0 0.0
    %1392 = vmatpush.xpose.msra.mxu0 0.0
    %1393 = vmatpush.xpose.msra.mxu0 %v1376
    %1394 = vmatmul.f32.gmra.mxu0 %v1374
    %v1395 = vpop.f32.mrf.mxu0
    %v1396 = vadd.f32 0.0, %v1395
    %1397 = vdwg.mxu0
    %1398 = vrot.lane.b32.xlu0 %v1195, 96
    %v1399 = vpop.permute.xlu0 %1398
    %v1400 = vsel %vm281, %v1195, 0
    %v1402 = vsel %vm281, %v1399, 0
    %1404 = vmatpush.xpose.msra.mxu0 0.0
    %1405 = vmatpush.xpose.msra.mxu0 0.0
    %1406 = vmatpush.xpose.msra.mxu0 0.0
    %1407 = vmatpush.xpose.msra.mxu0 0.0
    %1408 = vmatpush.xpose.msra.mxu0 0.0
    %1409 = vmatpush.xpose.msra.mxu0 0.0
    %1410 = vmatpush.xpose.msra.mxu0 0.0
    %1411 = vmatpush.xpose.msra.mxu0 0.0
    %1412 = vmatpush.xpose.msra.mxu0 0.0
    %1413 = vmatpush.xpose.msra.mxu0 0.0
    %1414 = vmatpush.xpose.msra.mxu0 0.0
    %1415 = vmatpush.xpose.msra.mxu0 0.0
    %1416 = vmatpush.xpose.msra.mxu0 0.0
    %1417 = vmatpush.xpose.msra.mxu0 0.0
    %1418 = vmatpush.xpose.msra.mxu0 0.0
    %1419 = vmatpush.xpose.msra.mxu0 %v1402
    %1420 = vmatmul.f32.gmra.mxu0 %v1400
    %v1421 = vpop.f32.mrf.mxu0
    %v1422 = vadd.f32 0.0, %v1421
    %1423 = vdwg.mxu0
    %v1424 = vmul.f32 %v1240, 0.35355338
    %v1425 = vmul.f32 %v1266, 0.35355338
    %v1426 = vmul.f32 %v1292, 0.35355338
    %v1427 = vmul.f32 %v1318, 0.35355338
    %v1428 = vmul.f32 %v1344, 0.35355338
    %v1429 = vmul.f32 %v1370, 0.35355338
    %v1430 = vmul.f32 %v1396, 0.35355338
    %v1431 = vmul.f32 %v1422, 0.35355338
    %v1432 = vadd.f32 %v1424, %v109
    %v1433 = vadd.f32 %v1425, %v110
    %v1434 = vadd.f32 %v1426, %v109
    %v1435 = vadd.f32 %v1427, %v110
    %v1436 = vadd.f32 %v1428, %v109
    %v1437 = vadd.f32 %v1429, %v110
    %v1438 = vadd.f32 %v1430, %v109
    %v1439 = vadd.f32 %v1431, %v110
    %v1440 = vsel %vm281, %v1432, -inf
    %1441 = vmax.xlane.f32.xlu0 %v1440
    %v1442 = vpop.xlane.xlu0 %1441
    %v1443 = vsel %vm281, %v1433, -inf
    %1444 = vmax.xlane.f32.xlu0 %v1443
    %v1445 = vpop.xlane.xlu0 %1444
    %v1446 = vsel %vm281, %v1434, -inf
    %1447 = vmax.xlane.f32.xlu0 %v1446
    %v1448 = vpop.xlane.xlu0 %1447
    %v1449 = vsel %vm281, %v1435, -inf
    %1450 = vmax.xlane.f32.xlu0 %v1449
    %v1451 = vpop.xlane.xlu0 %1450
    %v1452 = vsel %vm281, %v1436, -inf
    %1453 = vmax.xlane.f32.xlu0 %v1452
    %v1454 = vpop.xlane.xlu0 %1453
    %v1455 = vsel %vm281, %v1437, -inf
    %1456 = vmax.xlane.f32.xlu0 %v1455
    %v1457 = vpop.xlane.xlu0 %1456
    %v1458 = vsel %vm281, %v1438, -inf
    %1459 = vmax.xlane.f32.xlu0 %v1458
    %v1460 = vpop.xlane.xlu0 %1459
    %v1461 = vsel %vm281, %v1439, -inf
    %1462 = vmax.xlane.f32.xlu0 %v1461
    %v1463 = vpop.xlane.xlu0 %1462
    %v1464 = vsub.f32 %v1432, %v1442
    %v1465 = vsub.f32 %v1433, %v1445
    %v1466 = vsub.f32 %v1434, %v1448
    %v1467 = vsub.f32 %v1435, %v1451
    %v1468 = vsub.f32 %v1436, %v1454
    %v1469 = vsub.f32 %v1437, %v1457
    %v1470 = vsub.f32 %v1438, %v1460
    %v1471 = vsub.f32 %v1439, %v1463
    %v1472 = vmul.f32 %v1464, 1.442695
    %v1473 = vpow.pop %v1472
    %v1474 = vmul.f32 %v1465, 1.442695
    %v1475 = vpow.pop %v1474
    %v1476 = vmul.f32 %v1466, 1.442695
    %v1477 = vpow.pop %v1476
    %v1478 = vmul.f32 %v1467, 1.442695
    %v1479 = vpow.pop %v1478
    %v1480 = vmul.f32 %v1468, 1.442695
    %v1481 = vpow.pop %v1480
    %v1482 = vmul.f32 %v1469, 1.442695
    %v1483 = vpow.pop %v1482
    %v1484 = vmul.f32 %v1470, 1.442695
    %v1485 = vpow.pop %v1484
    %v1486 = vmul.f32 %v1471, 1.442695
    %v1487 = vpow.pop %v1486
    %v1488 = vsel %vm281, %v1473, 0.0
    %1489 = vadd.xlane.f32.xlu0 %v1488
    %v1490 = vpop.xlane.xlu0 %1489
    %v1491 = vsel %vm281, %v1475, 0.0
    %1492 = vadd.xlane.f32.xlu0 %v1491
    %v1493 = vpop.xlane.xlu0 %1492
    %v1494 = vsel %vm281, %v1477, 0.0
    %1495 = vadd.xlane.f32.xlu0 %v1494
    %v1496 = vpop.xlane.xlu0 %1495
    %v1497 = vsel %vm281, %v1479, 0.0
    %1498 = vadd.xlane.f32.xlu0 %v1497
    %v1499 = vpop.xlane.xlu0 %1498
    %v1500 = vsel %vm281, %v1481, 0.0
    %1501 = vadd.xlane.f32.xlu0 %v1500
    %v1502 = vpop.xlane.xlu0 %1501
    %v1503 = vsel %vm281, %v1483, 0.0
    %1504 = vadd.xlane.f32.xlu0 %v1503
    %v1505 = vpop.xlane.xlu0 %1504
    %v1506 = vsel %vm281, %v1485, 0.0
    %1507 = vadd.xlane.f32.xlu0 %v1506
    %v1508 = vpop.xlane.xlu0 %1507
    %v1509 = vsel %vm281, %v1487, 0.0
    %1510 = vadd.xlane.f32.xlu0 %v1509
    %v1511 = vpop.xlane.xlu0 %1510
    %v1512 = vrcp.pop %v1490
    %v1513 = vrcp.pop %v1493
    %v1514 = vrcp.pop %v1496
    %v1515 = vrcp.pop %v1499
    %v1516 = vrcp.pop %v1502
    %v1517 = vrcp.pop %v1505
    %v1518 = vrcp.pop %v1508
    %v1519 = vrcp.pop %v1511
    %v1520 = vmul.f32 %v1473, %v1512
    %v1521 = vmul.f32 %v1475, %v1513
    %v1522 = vmul.f32 %v1477, %v1514
    %v1523 = vmul.f32 %v1479, %v1515
    %v1524 = vmul.f32 %v1481, %v1516
    %v1525 = vmul.f32 %v1483, %v1517
    %v1526 = vmul.f32 %v1485, %v1518
    %v1527 = vmul.f32 %v1487, %v1519
    %v1529 = vsel %vm281, %v1520, 0
    %1531 = vmatpush.msra.mxu0 0.0
    %1532 = vmatpush.msra.mxu0 0.0
    %1533 = vmatpush.msra.mxu0 0.0
    %1534 = vmatpush.msra.mxu0 0.0
    %1535 = vmatpush.msra.mxu0 0.0
    %1536 = vmatpush.msra.mxu0 0.0
    %1537 = vmatpush.msra.mxu0 0.0
    %1538 = vmatpush.msra.mxu0 0.0
    %1539 = vmatpush.msra.mxu0 0.0
    %1540 = vmatpush.msra.mxu0 0.0
    %1541 = vmatpush.msra.mxu0 0.0
    %1542 = vmatpush.msra.mxu0 0.0
    %1543 = vmatpush.msra.mxu0 0.0
    %1544 = vmatpush.msra.mxu0 0.0
    %1545 = vmatpush.msra.mxu0 0.0
    %1546 = vmatpush.msra.mxu0 %v1163
    %1547 = vmatmul.f32.gmra.mxu0 %v1529
    %v1548 = vpop.f32.mrf.mxu0
    %v1549 = vadd.f32 0.0, %v1548
    %1550 = vdwg.mxu0
    %v1552 = vsel %vm281, %v1521, 0
    %1554 = vmatpush.msra.mxu0 0.0
    %1555 = vmatpush.msra.mxu0 0.0
    %1556 = vmatpush.msra.mxu0 0.0
    %1557 = vmatpush.msra.mxu0 0.0
    %1558 = vmatpush.msra.mxu0 0.0
    %1559 = vmatpush.msra.mxu0 0.0
    %1560 = vmatpush.msra.mxu0 0.0
    %1561 = vmatpush.msra.mxu0 0.0
    %1562 = vmatpush.msra.mxu0 0.0
    %1563 = vmatpush.msra.mxu0 0.0
    %1564 = vmatpush.msra.mxu0 0.0
    %1565 = vmatpush.msra.mxu0 0.0
    %1566 = vmatpush.msra.mxu0 0.0
    %1567 = vmatpush.msra.mxu0 0.0
    %1568 = vmatpush.msra.mxu0 0.0
    %1569 = vmatpush.msra.mxu0 %v1166
    %1570 = vmatmul.f32.gmra.mxu0 %v1552
    %v1571 = vpop.f32.mrf.mxu0
    %v1572 = vadd.f32 0.0, %v1571
    %1573 = vdwg.mxu0
    %v1575 = vsel %vm281, %v1522, 0
    %1577 = vmatpush.msra.mxu0 0.0
    %1578 = vmatpush.msra.mxu0 0.0
    %1579 = vmatpush.msra.mxu0 0.0
    %1580 = vmatpush.msra.mxu0 0.0
    %1581 = vmatpush.msra.mxu0 0.0
    %1582 = vmatpush.msra.mxu0 0.0
    %1583 = vmatpush.msra.mxu0 0.0
    %1584 = vmatpush.msra.mxu0 0.0
    %1585 = vmatpush.msra.mxu0 0.0
    %1586 = vmatpush.msra.mxu0 0.0
    %1587 = vmatpush.msra.mxu0 0.0
    %1588 = vmatpush.msra.mxu0 0.0
    %1589 = vmatpush.msra.mxu0 0.0
    %1590 = vmatpush.msra.mxu0 0.0
    %1591 = vmatpush.msra.mxu0 0.0
    %1592 = vmatpush.msra.mxu0 %v1199
    %1593 = vmatmul.f32.gmra.mxu0 %v1575
    %v1594 = vpop.f32.mrf.mxu0
    %v1595 = vadd.f32 0.0, %v1594
    %1596 = vdwg.mxu0
    %v1598 = vsel %vm281, %v1523, 0
    %1600 = vmatpush.msra.mxu0 0.0
    %1601 = vmatpush.msra.mxu0 0.0
    %1602 = vmatpush.msra.mxu0 0.0
    %1603 = vmatpush.msra.mxu0 0.0
    %1604 = vmatpush.msra.mxu0 0.0
    %1605 = vmatpush.msra.mxu0 0.0
    %1606 = vmatpush.msra.mxu0 0.0
    %1607 = vmatpush.msra.mxu0 0.0
    %1608 = vmatpush.msra.mxu0 0.0
    %1609 = vmatpush.msra.mxu0 0.0
    %1610 = vmatpush.msra.mxu0 0.0
    %1611 = vmatpush.msra.mxu0 0.0
    %1612 = vmatpush.msra.mxu0 0.0
    %1613 = vmatpush.msra.mxu0 0.0
    %1614 = vmatpush.msra.mxu0 0.0
    %1615 = vmatpush.msra.mxu0 %v1201
    %1616 = vmatmul.f32.gmra.mxu0 %v1598
    %v1617 = vpop.f32.mrf.mxu0
    %v1618 = vadd.f32 0.0, %v1617
    %1619 = vdwg.mxu0
    %v1621 = vsel %vm281, %v1524, 0
    %1623 = vmatpush.msra.mxu0 0.0
    %1624 = vmatpush.msra.mxu0 0.0
    %1625 = vmatpush.msra.mxu0 0.0
    %1626 = vmatpush.msra.mxu0 0.0
    %1627 = vmatpush.msra.mxu0 0.0
    %1628 = vmatpush.msra.mxu0 0.0
    %1629 = vmatpush.msra.mxu0 0.0
    %1630 = vmatpush.msra.mxu0 0.0
    %1631 = vmatpush.msra.mxu0 0.0
    %1632 = vmatpush.msra.mxu0 0.0
    %1633 = vmatpush.msra.mxu0 0.0
    %1634 = vmatpush.msra.mxu0 0.0
    %1635 = vmatpush.msra.mxu0 0.0
    %1636 = vmatpush.msra.mxu0 0.0
    %1637 = vmatpush.msra.mxu0 0.0
    %1638 = vmatpush.msra.mxu0 %v1205
    %1639 = vmatmul.f32.gmra.mxu0 %v1621
    %v1640 = vpop.f32.mrf.mxu0
    %v1641 = vadd.f32 0.0, %v1640
    %1642 = vdwg.mxu0
    %v1644 = vsel %vm281, %v1525, 0
    %1646 = vmatpush.msra.mxu0 0.0
    %1647 = vmatpush.msra.mxu0 0.0
    %1648 = vmatpush.msra.mxu0 0.0
    %1649 = vmatpush.msra.mxu0 0.0
    %1650 = vmatpush.msra.mxu0 0.0
    %1651 = vmatpush.msra.mxu0 0.0
    %1652 = vmatpush.msra.mxu0 0.0
    %1653 = vmatpush.msra.mxu0 0.0
    %1654 = vmatpush.msra.mxu0 0.0
    %1655 = vmatpush.msra.mxu0 0.0
    %1656 = vmatpush.msra.mxu0 0.0
    %1657 = vmatpush.msra.mxu0 0.0
    %1658 = vmatpush.msra.mxu0 0.0
    %1659 = vmatpush.msra.mxu0 0.0
    %1660 = vmatpush.msra.mxu0 0.0
    %1661 = vmatpush.msra.mxu0 %v1207
    %1662 = vmatmul.f32.gmra.mxu0 %v1644
    %v1663 = vpop.f32.mrf.mxu0
    %v1664 = vadd.f32 0.0, %v1663
    %1665 = vdwg.mxu0
    %v1667 = vsel %vm281, %v1526, 0
    %1669 = vmatpush.msra.mxu0 0.0
    %1670 = vmatpush.msra.mxu0 0.0
    %1671 = vmatpush.msra.mxu0 0.0
    %1672 = vmatpush.msra.mxu0 0.0
    %1673 = vmatpush.msra.mxu0 0.0
    %1674 = vmatpush.msra.mxu0 0.0
    %1675 = vmatpush.msra.mxu0 0.0
    %1676 = vmatpush.msra.mxu0 0.0
    %1677 = vmatpush.msra.mxu0 0.0
    %1678 = vmatpush.msra.mxu0 0.0
    %1679 = vmatpush.msra.mxu0 0.0
    %1680 = vmatpush.msra.mxu0 0.0
    %1681 = vmatpush.msra.mxu0 0.0
    %1682 = vmatpush.msra.mxu0 0.0
    %1683 = vmatpush.msra.mxu0 0.0
    %1684 = vmatpush.msra.mxu0 %v1211
    %1685 = vmatmul.f32.gmra.mxu0 %v1667
    %v1686 = vpop.f32.mrf.mxu0
    %v1687 = vadd.f32 0.0, %v1686
    %1688 = vdwg.mxu0
    %v1690 = vsel %vm281, %v1527, 0
    %1692 = vmatpush.msra.mxu0 0.0
    %1693 = vmatpush.msra.mxu0 0.0
    %1694 = vmatpush.msra.mxu0 0.0
    %1695 = vmatpush.msra.mxu0 0.0
    %1696 = vmatpush.msra.mxu0 0.0
    %1697 = vmatpush.msra.mxu0 0.0
    %1698 = vmatpush.msra.mxu0 0.0
    %1699 = vmatpush.msra.mxu0 0.0
    %1700 = vmatpush.msra.mxu0 0.0
    %1701 = vmatpush.msra.mxu0 0.0
    %1702 = vmatpush.msra.mxu0 0.0
    %1703 = vmatpush.msra.mxu0 0.0
    %1704 = vmatpush.msra.mxu0 0.0
    %1705 = vmatpush.msra.mxu0 0.0
    %1706 = vmatpush.msra.mxu0 0.0
    %1707 = vmatpush.msra.mxu0 %v1213
    %1708 = vmatmul.f32.gmra.mxu0 %v1690
    %v1709 = vpop.f32.mrf.mxu0
    %v1710 = vadd.f32 0.0, %v1709
    %1711 = vdwg.mxu0
    %s1712 = scalar_lea.vmem %s7, 32
    %v1713 = vld [vmem:[%s1712] sm:$0xff]
    %v1714 = vld [vmem:[%s1712 + $0x8] sm:$0xff]
    %v1715 = vld [vmem:[%s1712 + $0x10] sm:$0xff]
    %v1716 = vld [vmem:[%s1712 + $0x18] sm:$0xff]
    %v1718 = vsel %vm281, %v1549, 0
    %v1721 = vsel %vm281, %v1572, 0
    %1723 = vmatpush.msra.mxu0 0.0
    %1724 = vmatpush.msra.mxu0 0.0
    %1725 = vmatpush.msra.mxu0 0.0
    %1726 = vmatpush.msra.mxu0 0.0
    %1727 = vmatpush.msra.mxu0 0.0
    %1728 = vmatpush.msra.mxu0 0.0
    %1729 = vmatpush.msra.mxu0 0.0
    %1730 = vmatpush.msra.mxu0 0.0
    %1731 = vmatpush.msra.mxu0 0.0
    %1732 = vmatpush.msra.mxu0 0.0
    %1733 = vmatpush.msra.mxu0 0.0
    %1734 = vmatpush.msra.mxu0 0.0
    %1735 = vmatpush.msra.mxu0 0.0
    %1736 = vmatpush.msra.mxu0 0.0
    %1737 = vmatpush.msra.mxu0 0.0
    %1738 = vmatpush.msra.mxu0 %v1713
    %1739 = vmatmul.f32.gmra.mxu0 %v1718
    %v1740 = vpop.f32.mrf.mxu0
    %v1741 = vadd.f32 0.0, %v1740
    %1742 = vmatmul.f32.gmra.mxu0 %v1721
    %v1743 = vpop.f32.mrf.mxu0
    %v1744 = vadd.f32 0.0, %v1743
    %1745 = vdwg.mxu0
    %v1746 = vadd.f32 %v1064, %v1741
    %v1747 = vadd.f32 %v1065, %v1744
    %v1749 = vsel %vm281, %v1595, 0
    %v1752 = vsel %vm281, %v1618, 0
    %1754 = vmatpush.msra.mxu0 0.0
    %1755 = vmatpush.msra.mxu0 0.0
    %1756 = vmatpush.msra.mxu0 0.0
    %1757 = vmatpush.msra.mxu0 0.0
    %1758 = vmatpush.msra.mxu0 0.0
    %1759 = vmatpush.msra.mxu0 0.0
    %1760 = vmatpush.msra.mxu0 0.0
    %1761 = vmatpush.msra.mxu0 0.0
    %1762 = vmatpush.msra.mxu0 0.0
    %1763 = vmatpush.msra.mxu0 0.0
    %1764 = vmatpush.msra.mxu0 0.0
    %1765 = vmatpush.msra.mxu0 0.0
    %1766 = vmatpush.msra.mxu0 0.0
    %1767 = vmatpush.msra.mxu0 0.0
    %1768 = vmatpush.msra.mxu0 0.0
    %1769 = vmatpush.msra.mxu0 %v1714
    %1770 = vmatmul.f32.gmra.mxu0 %v1749
    %v1771 = vpop.f32.mrf.mxu0
    %v1772 = vadd.f32 0.0, %v1771
    %1773 = vmatmul.f32.gmra.mxu0 %v1752
    %v1774 = vpop.f32.mrf.mxu0
    %v1775 = vadd.f32 0.0, %v1774
    %1776 = vdwg.mxu0
    %v1777 = vadd.f32 %v1746, %v1772
    %v1778 = vadd.f32 %v1747, %v1775
    %v1780 = vsel %vm281, %v1641, 0
    %v1783 = vsel %vm281, %v1664, 0
    %1785 = vmatpush.msra.mxu0 0.0
    %1786 = vmatpush.msra.mxu0 0.0
    %1787 = vmatpush.msra.mxu0 0.0
    %1788 = vmatpush.msra.mxu0 0.0
    %1789 = vmatpush.msra.mxu0 0.0
    %1790 = vmatpush.msra.mxu0 0.0
    %1791 = vmatpush.msra.mxu0 0.0
    %1792 = vmatpush.msra.mxu0 0.0
    %1793 = vmatpush.msra.mxu0 0.0
    %1794 = vmatpush.msra.mxu0 0.0
    %1795 = vmatpush.msra.mxu0 0.0
    %1796 = vmatpush.msra.mxu0 0.0
    %1797 = vmatpush.msra.mxu0 0.0
    %1798 = vmatpush.msra.mxu0 0.0
    %1799 = vmatpush.msra.mxu0 0.0
    %1800 = vmatpush.msra.mxu0 %v1715
    %1801 = vmatmul.f32.gmra.mxu0 %v1780
    %v1802 = vpop.f32.mrf.mxu0
    %v1803 = vadd.f32 0.0, %v1802
    %1804 = vmatmul.f32.gmra.mxu0 %v1783
    %v1805 = vpop.f32.mrf.mxu0
    %v1806 = vadd.f32 0.0, %v1805
    %1807 = vdwg.mxu0
    %v1808 = vadd.f32 %v1777, %v1803
    %v1809 = vadd.f32 %v1778, %v1806
    %v1811 = vsel %vm281, %v1687, 0
    %v1814 = vsel %vm281, %v1710, 0
    %1816 = vmatpush.msra.mxu0 0.0
    %1817 = vmatpush.msra.mxu0 0.0
    %1818 = vmatpush.msra.mxu0 0.0
    %1819 = vmatpush.msra.mxu0 0.0
    %1820 = vmatpush.msra.mxu0 0.0
    %1821 = vmatpush.msra.mxu0 0.0
    %1822 = vmatpush.msra.mxu0 0.0
    %1823 = vmatpush.msra.mxu0 0.0
    %1824 = vmatpush.msra.mxu0 0.0
    %1825 = vmatpush.msra.mxu0 0.0
    %1826 = vmatpush.msra.mxu0 0.0
    %1827 = vmatpush.msra.mxu0 0.0
    %1828 = vmatpush.msra.mxu0 0.0
    %1829 = vmatpush.msra.mxu0 0.0
    %1830 = vmatpush.msra.mxu0 0.0
    %1831 = vmatpush.msra.mxu0 %v1716
    %1832 = vmatmul.f32.gmra.mxu0 %v1811
    %v1833 = vpop.f32.mrf.mxu0
    %v1834 = vadd.f32 0.0, %v1833
    %1835 = vmatmul.f32.gmra.mxu0 %v1814
    %v1836 = vpop.f32.mrf.mxu0
    %v1837 = vadd.f32 0.0, %v1836
    %1838 = vdwg.mxu0
    %v1839 = vadd.f32 %v1808, %v1834
    %v1840 = vadd.f32 %v1809, %v1837
    %s1841 = scalar_lea.vmem %s8, 1
    %v1842 = vld [vmem:[%s1841] sm:$0x1]
    %v1843 = vmul.f32 %v1839, %v1839
    %v1844 = vmul.f32 %v1840, %v1840
    %v1845 = vsel %vm118, %v1843, 0.0
    %1846 = vadd.xlane.f32.xlu0 %v1845
    %v1847 = vpop.xlane.xlu0 %1846
    %v1848 = vsel %vm118, %v1844, 0.0
    %1849 = vadd.xlane.f32.xlu0 %v1848
    %v1850 = vpop.xlane.xlu0 %1849
    %v1851 = vmul.f32 %v1847, %v131
    %v1852 = vmul.f32 %v1850, %v131
    %v1853 = vadd.f32 %v1851, 1e-05
    %v1854 = vadd.f32 %v1852, 1e-05
    %v1855 = vrsqrt.pop %v1853
    %v1856 = vmul.f32 %v1855, %v1853
    %v1857 = vmul.f32 %v1856, %v1855
    %v1858 = vmul.f32 0.5, %v1857
    %v1859 = vsub.f32 1.5, %v1858
    %v1860 = vmul.f32 %v1855, %v1859
    %vm1861 = vweird.f32 %v1853
    %vm1862 = vweird.f32 %v1855
    %vm1863 = vmor %vm1861, %vm1862
    %v1864 = vsel %vm1863, %v1855, %v1860
    %v1865 = vrsqrt.pop %v1854
    %v1866 = vmul.f32 %v1865, %v1854
    %v1867 = vmul.f32 %v1866, %v1865
    %v1868 = vmul.f32 0.5, %v1867
    %v1869 = vsub.f32 1.5, %v1868
    %v1870 = vmul.f32 %v1865, %v1869
    %vm1871 = vweird.f32 %v1854
    %vm1872 = vweird.f32 %v1865
    %vm1873 = vmor %vm1871, %vm1872
    %v1874 = vsel %vm1873, %v1865, %v1870
    %v1875 = vmul.f32 %v1839, %v1864
    %v1876 = vmul.f32 %v1840, %v1874
    %v1878 = vperm.slane %v1842, 0
    %v1880 = vmul.f32 %v1875, %v1878
    %v1881 = vmul.f32 %v1876, %v1878
    %s1882 = scalar_lea.vmem %s9, 32
    %v1883 = vld [vmem:[%s1882] sm:$0xff]
    %v1884 = vld [vmem:[%s1882 + $0x8] sm:$0xff]
    %v1885 = vld [vmem:[%s1882 + $0x10] sm:$0xff]
    %v1886 = vld [vmem:[%s1882 + $0x18] sm:$0xff]
    %v1888 = vsel %vm118, %v1880, 0
    %v1891 = vsel %vm118, %v1881, 0
    %1893 = vmatpush.msra.mxu0 0.0
    %1894 = vmatpush.msra.mxu0 0.0
    %1895 = vmatpush.msra.mxu0 0.0
    %1896 = vmatpush.msra.mxu0 0.0
    %1897 = vmatpush.msra.mxu0 0.0
    %1898 = vmatpush.msra.mxu0 0.0
    %1899 = vmatpush.msra.mxu0 0.0
    %1900 = vmatpush.msra.mxu0 0.0
    %1901 = vmatpush.msra.mxu0 0.0
    %1902 = vmatpush.msra.mxu0 0.0
    %1903 = vmatpush.msra.mxu0 0.0
    %1904 = vmatpush.msra.mxu0 0.0
    %1905 = vmatpush.msra.mxu0 %v1886
    %1906 = vmatpush.msra.mxu0 %v1885
    %1907 = vmatpush.msra.mxu0 %v1884
    %1908 = vmatpush.msra.mxu0 %v1883
    %1909 = vmatmul.f32.gmra.mxu0 %v1888
    %v1910 = vpop.f32.mrf.mxu0
    %v1911 = vadd.f32 0.0, %v1910
    %1912 = vmatmul.f32.gmra.mxu0 %v1891
    %v1913 = vpop.f32.mrf.mxu0
    %v1914 = vadd.f32 0.0, %v1913
    %1915 = vdwg.mxu0
    %v1916 = vxor.u32 %v1911, 2147483648
    %v1917 = vxor.u32 %v1914, 2147483648
    %v1918 = vmul.f32 %v1916, 1.442695
    %v1919 = vpow.pop %v1918
    %v1920 = vmul.f32 %v1917, 1.442695
    %v1921 = vpow.pop %v1920
    %v1922 = vadd.f32 %v1919, 1.0
    %v1923 = vadd.f32 %v1921, 1.0
    %v1924 = vrcp.pop %v1922
    %v1925 = vmul.f32 %v1922, %v1924
    %v1926 = vsub.f32 1.0, %v1925
    %v1927 = vmul.f32 %v1924, %v1926
    %v1928 = vadd.f32 %v1924, %v1927
    %vm1929 = vweird.f32 %v1922
    %vm1930 = vweird.f32 %v1924
    %vm1931 = vmor %vm1929, %vm1930
    %v1932 = vsel %vm1931, %v1924, %v1928
    %v1933 = vand.u32 2147483647, %v1922
    %vm1934 = vcmp.eq.f32.partialorder %v1933, 8.507059e+37
    %v1935 = vand.u32 %v1922, 2147483648
    %v1936 = vor.u32 1.1754944e-38, %v1935
    %v1937 = vsel %vm1934, %v1936, %v1932
    %v1938 = vmul.f32 1.0, %v1937
    %v1939 = vrcp.pop %v1923
    %v1940 = vmul.f32 %v1923, %v1939
    %v1941 = vsub.f32 1.0, %v1940
    %v1942 = vmul.f32 %v1939, %v1941
    %v1943 = vadd.f32 %v1939, %v1942
    %vm1944 = vweird.f32 %v1923
    %vm1945 = vweird.f32 %v1939
    %vm1946 = vmor %vm1944, %vm1945
    %v1947 = vsel %vm1946, %v1939, %v1943
    %v1948 = vand.u32 2147483647, %v1923
    %vm1949 = vcmp.eq.f32.partialorder %v1948, 8.507059e+37
    %v1950 = vand.u32 %v1923, 2147483648
    %v1951 = vor.u32 1.1754944e-38, %v1950
    %v1952 = vsel %vm1949, %v1951, %v1947
    %v1953 = vmul.f32 1.0, %v1952
    %v1954 = vmul.f32 %v1911, %v1938
    %v1955 = vmul.f32 %v1914, %v1953
    %1958 = vrot.lane.b32.xlu0 %v1911, 64
    %v1959 = vpop.permute.xlu0 %1958
    %1960 = vrot.lane.b32.xlu0 %v1914, 64
    %v1961 = vpop.permute.xlu0 %1960
    %v1964 = vmul.f32 %v1954, %v1959
    %v1965 = vmul.f32 %v1955, %v1961
    %s1966 = scalar_lea.vmem %s10, 64
    %v1967 = vld [vmem:[%s1966] sm:$0xff]
    %v1968 = vld [vmem:[%s1966 + $0x8] sm:$0xff]
    %v1969 = vld [vmem:[%s1966 + $0x10] sm:$0xff]
    %v1970 = vld [vmem:[%s1966 + $0x18] sm:$0xff]
    %v1971 = vld [vmem:[%s1966 + $0x20] sm:$0xff]
    %v1972 = vld [vmem:[%s1966 + $0x28] sm:$0xff]
    %v1973 = vld [vmem:[%s1966 + $0x30] sm:$0xff]
    %v1974 = vld [vmem:[%s1966 + $0x38] sm:$0xff]
    %v1976 = vsel %vm66, %v1964, 0
    %v1979 = vsel %vm66, %v1965, 0
    %1981 = vmatpush.msra.mxu0 0.0
    %1982 = vmatpush.msra.mxu0 0.0
    %1983 = vmatpush.msra.mxu0 0.0
    %1984 = vmatpush.msra.mxu0 0.0
    %1985 = vmatpush.msra.mxu0 0.0
    %1986 = vmatpush.msra.mxu0 0.0
    %1987 = vmatpush.msra.mxu0 0.0
    %1988 = vmatpush.msra.mxu0 0.0
    %1989 = vmatpush.msra.mxu0 %v1974
    %1990 = vmatpush.msra.mxu0 %v1973
    %1991 = vmatpush.msra.mxu0 %v1972
    %1992 = vmatpush.msra.mxu0 %v1971
    %1993 = vmatpush.msra.mxu0 %v1970
    %1994 = vmatpush.msra.mxu0 %v1969
    %1995 = vmatpush.msra.mxu0 %v1968
    %1996 = vmatpush.msra.mxu0 %v1967
    %1997 = vmatmul.f32.gmra.mxu0 %v1976
    %v1998 = vpop.f32.mrf.mxu0
    %v1999 = vadd.f32 0.0, %v1998
    %2000 = vmatmul.f32.gmra.mxu0 %v1979
    %v2001 = vpop.f32.mrf.mxu0
    %v2002 = vadd.f32 0.0, %v2001
    %2003 = vdwg.mxu0
    %v2004 = vadd.f32 %v1839, %v1999
    %v2005 = vadd.f32 %v1840, %v2002
    %v2006 = vld [vmem:[%s11] sm:$0x1]
    %v2007 = vmul.f32 %v2004, %v2004
    %v2008 = vmul.f32 %v2005, %v2005
    %v2009 = vsel %vm118, %v2007, 0.0
    %2010 = vadd.xlane.f32.xlu0 %v2009
    %v2011 = vpop.xlane.xlu0 %2010
    %v2012 = vsel %vm118, %v2008, 0.0
    %2013 = vadd.xlane.f32.xlu0 %v2012
    %v2014 = vpop.xlane.xlu0 %2013
    %v2015 = vmul.f32 %v2011, %v131
    %v2016 = vmul.f32 %v2014, %v131
    %v2017 = vadd.f32 %v2015, 1e-05
    %v2018 = vadd.f32 %v2016, 1e-05
    %v2019 = vrsqrt.pop %v2017
    %v2020 = vmul.f32 %v2019, %v2017
    %v2021 = vmul.f32 %v2020, %v2019
    %v2022 = vmul.f32 0.5, %v2021
    %v2023 = vsub.f32 1.5, %v2022
    %v2024 = vmul.f32 %v2019, %v2023
    %vm2025 = vweird.f32 %v2017
    %vm2026 = vweird.f32 %v2019
    %vm2027 = vmor %vm2025, %vm2026
    %v2028 = vsel %vm2027, %v2019, %v2024
    %v2029 = vrsqrt.pop %v2018
    %v2030 = vmul.f32 %v2029, %v2018
    %v2031 = vmul.f32 %v2030, %v2029
    %v2032 = vmul.f32 0.5, %v2031
    %v2033 = vsub.f32 1.5, %v2032
    %v2034 = vmul.f32 %v2029, %v2033
    %vm2035 = vweird.f32 %v2018
    %vm2036 = vweird.f32 %v2029
    %vm2037 = vmor %vm2035, %vm2036
    %v2038 = vsel %vm2037, %v2029, %v2034
    %v2039 = vmul.f32 %v2004, %v2028
    %v2040 = vmul.f32 %v2005, %v2038
    %v2042 = vperm.slane %v2006, 0
    %v2044 = vmul.f32 %v2039, %v2042
    %v2045 = vmul.f32 %v2040, %v2042
    %2046 = vst.msk [vmem:[#allocation2] sm:$0xff] %vm118, %v2044
    %2047 = vst.msk [vmem:[#allocation2 + $0x8] sm:$0xff] %vm118, %v2045
    // Predicated region
    $region50: #{moss_model_forward.1} parent=1 // pred_check
      _
    $region51: #{moss_model_forward.1} parent=1 // pred_check_branch
      %2049 = sbr.rel (0) target = $region53
    $region52: #{moss_model_forward.1} parent=1 // pred_region
      %2051 = vsyncadd [#allocation3], 0
      %s2052 = sshll.u32 [#allocation2], 4
      %s2053 = int_to_ptr.vmem [resolvable:$true] %s2052
      %s2054 = sshll.u32 %s12, 4
      %s2055 = int_to_ptr.hbm [resolvable:$true] %s2054
      %2060 = dma.vmem_to_hbm [thread:$0]  %s2053, 256, %s2055, [#allocation3], 128, 128, 8
    $region53: #{moss_model_forward.1} parent=1 // pred_fallthru
      _
    // Predicated region
    $region54: #{moss_model_forward.1} parent=1 // pred_check
      _
    $region55: #{moss_model_forward.1} parent=1 // pred_check_branch
      %2062 = sbr.rel (0) target = $region57
    $region56: #{moss_model_forward.1} parent=1 // pred_region
      %2064 = dma.done [#allocation3], 256
    $region57: #{moss_model_forward.1} parent=1 // pred_fallthru
      _
    %2065 = vsyncpa [#allocation3], 1

</llo_original>
